<compile_context>
chip_gen: v7x
topology: tpu7x:2x2x1
jax: 0.10.0
libtpu: 0.0.40
codegen_flags: <defaults>
</compile_context>

<pallas_src>
import math
import functools

import jax
import jax.numpy as jnp
from jax.experimental import pallas as pl
from jax.experimental.pallas import tpu as pltpu


# ----------------------------------------------------------------------------
# Generation-aware tiling / VMEM policy
# ----------------------------------------------------------------------------
def _hw_config():
    """Return (vmem_limit_bytes, row_tile_cap, mlp_tile_cap) for this TPU generation."""
    vmem_phys = 64 * 1024 * 1024                       # conservative default (v7x-like)
    try:
        info = pltpu.get_tpu_info()
        vmem_phys = int(getattr(info, "vmem_capacity_bytes", vmem_phys) or vmem_phys)
    except Exception:
        pass
    if vmem_phys >= 96 * 1024 * 1024:                  # v5e / v6e: 128 MiB physical VMEM
        return 80 * 1024 * 1024, 512, 1024
    return 40 * 1024 * 1024, 256, 512                  # v7x: 64 MiB physical VMEM


def _round_up(n, m):
    return ((n + m - 1) // m) * m


def _row_tiling(R, cap):
    """Row tile (multiple of 8, <= cap) and padded row count (multiple of the tile)."""
    tR = min(cap, _round_up(R, 8))
    if tR >= R and R >= 16:
        # A single row tile would leave one v7x TensorCore idle -> split in two.
        tR = _round_up(_round_up(R, 8) // 2, 8)
    R_pad = _round_up(R, tR)
    assert tR % 8 == 0 and R_pad % tR == 0
    return tR, R_pad


def _mid_tile(M, cap):
    """MLP hidden-dim tile: multiple of 128 dividing M, or the whole of M."""
    if M % 128 != 0 or M <= cap:
        return M
    best = 128
    for t in range(256, cap + 1, 128):
        if M % t == 0:
            best = t
    return best


def _pick_group(num_heads, head_dim, target=128):
    """Heads per grid step so the merged QKV projection fills the MXU N dimension."""
    for g in range(1, num_heads + 1):
        if num_heads % g == 0 and g * head_dim >= target:
            return g
    return num_heads


# ----------------------------------------------------------------------------
# Kernel A: LN1 + merged QKV projection + attention + fused out-projection + residual.
#           grid = (B, H // G); the head-group axis is an accumulation ("arbitrary").
# ----------------------------------------------------------------------------
def _attn_kernel(x_ref, ln1w_ref, ln1b_ref, wqkv_ref, bqkv_ref, wo_ref, bo_ref,
                 x1_ref, xn_scr, acc_scr, *, g_heads, head_dim):
    gi = pl.program_id(1)

    @pl.when(gi == 0)
    def _():
        # LayerNorm in f32 once per batch element, kept resident (bf16) across groups.
        x = x_ref[0]                                              # (S, E) f32
        mu = jnp.mean(x, axis=-1, keepdims=True)
        var = jnp.mean((x - mu) ** 2, axis=-1, keepdims=True)
        xn = (x - mu) * jax.lax.rsqrt(var + 1e-5) * ln1w_ref[...] + ln1b_ref[...]
        xn_scr[...] = xn.astype(jnp.bfloat16)
        acc_scr[...] = jnp.zeros_like(acc_scr)                    # attn accumulator (S, E)

    ghd = g_heads * head_dim
    # ONE merged QKV projection for the whole head group (bf16 MXU, f32 accumulate).
    # The 1/sqrt(hd) scale is already folded into the Q weight/bias columns.
    qkv = jnp.dot(xn_scr[...], wqkv_ref[0],
                  preferred_element_type=jnp.float32) + bqkv_ref[0]   # (S, 3*G*hd)

    for g in range(g_heads):                                      # static unroll
        lo = g * head_dim
        q = qkv[:, lo:lo + head_dim]
        k = qkv[:, ghd + lo:ghd + lo + head_dim]
        v = qkv[:, 2 * ghd + lo:2 * ghd + lo + head_dim]

        # scores = q @ k^T (contract last dims; no in-kernel transpose)
        s = jax.lax.dot_general(q.astype(jnp.bfloat16), k.astype(jnp.bfloat16),
                                (((1,), (1,)), ((), ())),
                                preferred_element_type=jnp.float32)   # (S, S)
        s = s - jnp.max(s, axis=-1, keepdims=True)                # stable softmax (f32)
        p = jnp.exp(s)
        p = p * pl.reciprocal(jnp.sum(p, axis=-1, keepdims=True), approx=True)

        ctx = jnp.dot(p.astype(jnp.bfloat16), v.astype(jnp.bfloat16),
                      preferred_element_type=jnp.float32)             # (S, hd)
        # Fused output projection: accumulate this head's contribution over all heads.
        acc_scr[...] += jnp.dot(ctx.astype(jnp.bfloat16), wo_ref[g],
                                preferred_element_type=jnp.float32)   # (S, E)

    @pl.when(gi == pl.num_programs(1) - 1)
    def _():
        # Lane-dense (S, E) store of the first residual: x1 = x + attn + bo.
        x1_ref[0] = (x_ref[0] + acc_scr[...] + bo_ref[...]).astype(x1_ref.dtype)


# ----------------------------------------------------------------------------
# Kernel B: LN2 + MLP (streamed over hidden dim M) + residual.
#           grid = (row tiles of B*S, M tiles); M is a reduction axis.
# ----------------------------------------------------------------------------
def _mlp_kernel(x1_ref, ln2w_ref, ln2b_ref, w1_ref, b1_ref, w2_ref, b2_ref,
                o_ref, xn_scr, acc_scr):
    m = pl.program_id(1)

    @pl.when(m == 0)
    def _():
        x1 = x1_ref[...]                                          # (tR, E) f32, resident
        mu = jnp.mean(x1, axis=-1, keepdims=True)
        var = jnp.mean((x1 - mu) ** 2, axis=-1, keepdims=True)
        xn = (x1 - mu) * jax.lax.rsqrt(var + 1e-5) * ln2w_ref[...] + ln2b_ref[...]
        xn_scr[...] = xn.astype(jnp.bfloat16)
        acc_scr[...] = jnp.zeros_like(acc_scr)

    # MLP streamed over the hidden dim M (w1/w2 tiles DMA'd per step).
    h1 = jnp.dot(xn_scr[...], w1_ref[...],
                 preferred_element_type=jnp.float32) + b1_ref[...]
    h1 = 0.5 * h1 * (1.0 + jax.lax.erf(h1 * (1.0 / math.sqrt(2.0))))  # exact GELU, f32
    acc_scr[...] += jnp.dot(h1.astype(jnp.bfloat16), w2_ref[...],
                            preferred_element_type=jnp.float32)

    @pl.when(m == pl.num_programs(1) - 1)
    def _():
        o_ref[...] = x1_ref[...] + acc_scr[...] + b2_ref[...]         # second residual


# ----------------------------------------------------------------------------
# Wrapper
# ----------------------------------------------------------------------------
def encoder_block(x, kp, num_heads):
    B, S, E = x.shape
    assert E % num_heads == 0
    hd = E // num_heads
    G = kp['group']
    NG = num_heads // G
    M = kp['w1_t'].shape[1]
    vmem_limit, row_cap, mid_cap = _hw_config()

    # ---- kernel A: attention block, one head-group per grid step ----
    x1 = pl.pallas_call(
        functools.partial(_attn_kernel, g_heads=G, head_dim=hd),
        out_shape=jax.ShapeDtypeStruct((B, S, E), jnp.float32),
        grid=(B, NG),
        in_specs=[
            pl.BlockSpec((1, S, E), lambda b, g: (b, 0, 0)),           # x (resident over g)
            pl.BlockSpec((1, E), lambda b, g: (0, 0)),                 # ln1_w
            pl.BlockSpec((1, E), lambda b, g: (0, 0)),                 # ln1_b
            pl.BlockSpec((1, E, 3 * G * hd), lambda b, g: (g, 0, 0)),  # packed QKV weights
            pl.BlockSpec((1, 1, 3 * G * hd), lambda b, g: (g, 0, 0)),  # packed QKV bias
            pl.BlockSpec((G, hd, E), lambda b, g: (g, 0, 0)),          # out-proj rows (group)
            pl.BlockSpec((1, E), lambda b, g: (0, 0)),                 # bo
        ],
        out_specs=pl.BlockSpec((1, S, E), lambda b, g: (b, 0, 0)),
        scratch_shapes=[pltpu.VMEM((S, E), jnp.bfloat16),              # LN1(x), bf16
                        pltpu.VMEM((S, E), jnp.float32)],              # attn accumulator
        compiler_params=pltpu.CompilerParams(
            # NOTE: the head-group axis MUST stay "arbitrary" (sequential) — the LN1
            # scratch and the attention accumulator are carried across it per batch elem.
            dimension_semantics=("parallel", "arbitrary"),
            vmem_limit_bytes=vmem_limit),
    )(x, kp['ln1_w'], kp['ln1_b'], kp['wqkv_g'], kp['bqkv_g'], kp['wo_h'], kp['bo'])

    # ---- kernel B: LN2 + MLP + residual, rows padded to an (8,·)-legal tile ----
    R = B * S
    tR, R_pad = _row_tiling(R, row_cap)
    tM = _mid_tile(M, mid_cap)
    assert tM == M or tM % 128 == 0
    x1_2d = x1.reshape(R, E)
    if R_pad != R:
        x1_2d = jnp.pad(x1_2d, ((0, R_pad - R), (0, 0)))

    out2d = pl.pallas_call(
        _mlp_kernel,
        out_shape=jax.ShapeDtypeStruct((R_pad, E), jnp.float32),
        grid=(R_pad // tR, M // tM),
        in_specs=[
            pl.BlockSpec((tR, E), lambda r, m: (r, 0)),    # x1 (resident across m)
            pl.BlockSpec((1, E), lambda r, m: (0, 0)),     # ln2_w
            pl.BlockSpec((1, E), lambda r, m: (0, 0)),     # ln2_b
            pl.BlockSpec((E, tM), lambda r, m: (0, m)),    # w1 tile
            pl.BlockSpec((1, tM), lambda r, m: (0, m)),    # b1 tile
            pl.BlockSpec((tM, E), lambda r, m: (m, 0)),    # w2 tile
            pl.BlockSpec((1, E), lambda r, m: (0, 0)),     # b2
        ],
        out_specs=pl.BlockSpec((tR, E), lambda r, m: (r, 0)),
        scratch_shapes=[pltpu.VMEM((tR, E), jnp.bfloat16),   # LN2(x1)
                        pltpu.VMEM((tR, E), jnp.float32)],   # MLP accumulator
        compiler_params=pltpu.CompilerParams(
            dimension_semantics=("parallel", "arbitrary"),
            vmem_limit_bytes=vmem_limit),
    )(x1_2d, kp['ln2_w'], kp['ln2_b'], kp['w1_t'], kp['b1'], kp['w2_t'], kp['b2'])

    return out2d[:R].reshape(B, S, E)


# ----------------------------------------------------------------------------
# Parameter init (torch-layout f32) and kernel-layout packing
# ----------------------------------------------------------------------------
def _xavier_uniform(key, out_f, in_f):
    limit = math.sqrt(6.0 / (in_f + out_f))
    return jax.random.uniform(key, (out_f, in_f), jnp.float32, -limit, limit)


def init_params(key, E, H, M):
    """Torch-layout f32 parameters (weights are (out_features, in_features))."""
    ks = jax.random.split(key, 6)
    w_in = _xavier_uniform(ks[0], 3 * E, E)            # MHA in_proj_weight (3E, E)
    wq, wk, wv = w_in[:E], w_in[E:2 * E], w_in[2 * E:]
    wo = _xavier_uniform(ks[1], E, E)                  # MHA out_proj.weight
    w1 = _xavier_uniform(ks[2], M, E)                  # MLP linear1
    w2 = _xavier_uniform(ks[3], E, M)                  # MLP linear2
    b1 = 1e-6 * jax.random.normal(ks[4], (M,), jnp.float32)
    b2 = 1e-6 * jax.random.normal(ks[5], (E,), jnp.float32)
    return dict(
        ln1_w=jnp.ones((E,), jnp.float32), ln1_b=jnp.zeros((E,), jnp.float32),
        wq=wq, wk=wk, wv=wv,
        bq=jnp.zeros((E,), jnp.float32), bk=jnp.zeros((E,), jnp.float32),
        bv=jnp.zeros((E,), jnp.float32),
        wo=wo, bo=jnp.zeros((E,), jnp.float32),
        ln2_w=jnp.ones((E,), jnp.float32), ln2_b=jnp.zeros((E,), jnp.float32),
        w1=w1, b1=b1, w2=w2, b2=b2,
    )


def pack_params(p, num_heads, group):
    """Pack torch-layout params into the head-grouped bf16 layout the kernels consume."""
    E = p['wq'].shape[0]
    hd = E // num_heads
    G = group
    NG = num_heads // G
    scale = 1.0 / math.sqrt(hd)

    def head_major(w):            # (E_out, E_in) -> (H, E_in, hd)  (projection is x @ w.T)
        return jnp.transpose(w.T.reshape(E, num_heads, hd), (1, 0, 2))

    wq_h = head_major(p['wq']) * scale                 # fold softmax scale into Q weights
    wk_h = head_major(p['wk'])
    wv_h = head_major(p['wv'])
    bq_h = p['bq'].reshape(num_heads, hd) * scale
    bk_h = p['bk'].reshape(num_heads, hd)
    bv_h = p['bv'].reshape(num_heads, hd)

    def group_cols(w_h):          # (H, E, hd) -> (NG, E, G*hd)
        return jnp.transpose(w_h.reshape(NG, G, E, hd), (0, 2, 1, 3)).reshape(NG, E, G * hd)

    def group_bias(b_h):          # (H, hd) -> (NG, 1, G*hd)
        return b_h.reshape(NG, 1, G * hd)

    wqkv_g = jnp.concatenate([group_cols(wq_h), group_cols(wk_h), group_cols(wv_h)],
                             axis=-1).astype(jnp.bfloat16)         # (NG, E, 3*G*hd)
    bqkv_g = jnp.concatenate([group_bias(bq_h), group_bias(bk_h), group_bias(bv_h)],
                             axis=-1).astype(jnp.float32)          # (NG, 1, 3*G*hd)

    # attn = ctx_concat @ wo.T + bo ; head h contributes ctx_h @ wo.T[h*hd:(h+1)*hd, :]
    wo_h = p['wo'].T.reshape(num_heads, hd, E).astype(jnp.bfloat16)

    return dict(
        group=G,
        ln1_w=p['ln1_w'].reshape(1, E), ln1_b=p['ln1_b'].reshape(1, E),
        wqkv_g=wqkv_g, bqkv_g=bqkv_g,
        wo_h=wo_h, bo=p['bo'].reshape(1, E),
        ln2_w=p['ln2_w'].reshape(1, E), ln2_b=p['ln2_b'].reshape(1, E),
        w1_t=p['w1'].T.astype(jnp.bfloat16), b1=p['b1'].reshape(1, -1),
        w2_t=p['w2'].T.astype(jnp.bfloat16), b2=p['b2'].reshape(1, E),
    )


# ----------------------------------------------------------------------------
# Pure-JAX f32 reference (for correctness check)
# ----------------------------------------------------------------------------
def encoder_block_ref(x, p, num_heads):
    B, S, E = x.shape
    hd = E // num_heads

    def ln(v, w, b):
        mu = jnp.mean(v, axis=-1, keepdims=True)
        var = jnp.mean((v - mu) ** 2, axis=-1, keepdims=True)
        return (v - mu) * jax.lax.rsqrt(var + 1e-5) * w + b

    xn = ln(x, p['ln1_w'], p['ln1_b'])
    q = xn @ p['wq'].T + p['bq']
    k = xn @ p['wk'].T + p['bk']
    v = xn @ p['wv'].T + p['bv']

    def split(t):
        return t.reshape(B, S, num_heads, hd).transpose(0, 2, 1, 3)

    q, k, v = split(q), split(k), split(v)
    s = jnp.einsum('bhqd,bhkd->bhqk', q, k) / math.sqrt(hd)
    a = jax.nn.softmax(s, axis=-1)
    ctx = jnp.einsum('bhqk,bhkd->bhqd', a, v).transpose(0, 2, 1, 3).reshape(B, S, E)
    attn = ctx @ p['wo'].T + p['bo']
    x1 = x + attn
    yn = ln(x1, p['ln2_w'], p['ln2_b'])
    h1 = yn @ p['w1'].T + p['b1']
    h1 = 0.5 * h1 * (1.0 + jax.lax.erf(h1 / math.sqrt(2.0)))
    y = h1 @ p['w2'].T + p['b2']
    return x1 + y


# ----------------------------------------------------------------------------
if __name__ == "__main__":
    B, S, E, H, M = 2, 8, 32, 4, 64      # batch, seq, embed, heads, mlp hidden

    key = jax.random.PRNGKey(0)
    k_inp, k_par = jax.random.split(key)
    x = jax.random.normal(k_inp, (B, S, E), jnp.float32)
    params = init_params(k_par, E, H, M)

    G = _pick_group(H, E // H)           # heads per grid step (all 4 at this toy size)
    kparams = pack_params(params, H, G)

    out = jax.block_until_ready(encoder_block(x, kparams, H))
    ref = encoder_block_ref(x, params, H)

    assert out.shape == (B, S, E)
    err = float(jnp.max(jnp.abs(out - ref)))
    # bf16 MXU operands + approx reciprocal in softmax -> loose tolerance vs f32 ref
    assert bool(jnp.allclose(out, ref, atol=5e-2, rtol=5e-2)), f"max abs err {err}"
    print("KERNEL_OK")
</pallas_src>

<mosaic_0001>
module attributes {stable_mosaic.version = 11 : i64} {
  func.func @_attn_kernel(%arg0: i32, %arg1: i32, %arg2: memref<1x8x32xf32, #tpu.memory_space<vmem>>, %arg3: memref<1x32xf32, #tpu.memory_space<vmem>>, %arg4: memref<1x32xf32, #tpu.memory_space<vmem>>, %arg5: memref<1x32x96xbf16, #tpu.memory_space<vmem>>, %arg6: memref<1x1x96xf32, #tpu.memory_space<vmem>>, %arg7: memref<4x8x32xbf16, #tpu.memory_space<vmem>>, %arg8: memref<1x32xf32, #tpu.memory_space<vmem>>, %arg9: memref<1x8x32xf32, #tpu.memory_space<vmem>>, %arg10: memref<8x32xbf16, #tpu.memory_space<vmem>>, %arg11: memref<8x32xf32, #tpu.memory_space<vmem>>) attributes {dimension_semantics = [#tpu.dimension_semantics<parallel>, #tpu.dimension_semantics<arbitrary>], iteration_bounds = array<i64: 2, 1>, scalar_prefetch = 0 : i64, scratch_operands = 2 : i64, tpu.core_type = #tpu.core_type<tc>, window_params = [{transform_indices = @transform_0, window_bounds = array<i64: 1, 8, 32>}, {pipeline_mode = #tpu.pipeline_mode<synchronous>, transform_indices = @transform_1, window_bounds = array<i64: 1, 32>}, {pipeline_mode = #tpu.pipeline_mode<synchronous>, transform_indices = @transform_2, window_bounds = array<i64: 1, 32>}, {transform_indices = @transform_3, window_bounds = array<i64: 1, 32, 96>}, {transform_indices = @transform_4, window_bounds = array<i64: 1, 1, 96>}, {transform_indices = @transform_5, window_bounds = array<i64: 4, 8, 32>}, {pipeline_mode = #tpu.pipeline_mode<synchronous>, transform_indices = @transform_6, window_bounds = array<i64: 1, 32>}, {transform_indices = @transform_7, window_bounds = array<i64: 1, 8, 32>}]} {
    %c0_i32 = arith.constant 0 : i32
    %0 = arith.cmpi eq, %arg1, %c0_i32 : i32
    %1 = arith.extui %0 : i1 to i32
    %c0_i32_0 = arith.constant 0 : i32
    %2 = arith.cmpi ne, %1, %c0_i32_0 : i32
    scf.if %2 {
      %c0_55 = arith.constant 0 : index
      %c0_56 = arith.constant 0 : index
      %c0_57 = arith.constant 0 : index
      %118 = vector.load %arg2[%c0_55, %c0_56, %c0_57] : memref<1x8x32xf32, #tpu.memory_space<vmem>>, vector<1x8x32xf32>
      %119 = vector.shape_cast %118 : vector<1x8x32xf32> to vector<8x32xf32>
      %cst_58 = arith.constant dense<0.000000e+00> : vector<8xf32>
      %120 = vector.multi_reduction <add>, %119, %cst_58 [1] : vector<8x32xf32> to vector<8xf32>
      %121 = vector.shape_cast %120 : vector<8xf32> to vector<8x1xf32>
      %cst_59 = arith.constant 3.200000e+01 : f32
      %122 = vector.broadcast %cst_59 : f32 to vector<8x1xf32>
      %123 = arith.divf %121, %122 : vector<8x1xf32>
      %124 = vector.broadcast %123 : vector<8x1xf32> to vector<8x32xf32>
      %125 = arith.subf %119, %124 : vector<8x32xf32>
      %126 = arith.mulf %125, %125 : vector<8x32xf32>
      %cst_60 = arith.constant dense<0.000000e+00> : vector<8xf32>
      %127 = vector.multi_reduction <add>, %126, %cst_60 [1] : vector<8x32xf32> to vector<8xf32>
      %128 = vector.shape_cast %127 : vector<8xf32> to vector<8x1xf32>
      %cst_61 = arith.constant 3.200000e+01 : f32
      %129 = vector.broadcast %cst_61 : f32 to vector<8x1xf32>
      %130 = arith.divf %128, %129 : vector<8x1xf32>
      %131 = vector.broadcast %123 : vector<8x1xf32> to vector<8x32xf32>
      %132 = arith.subf %119, %131 : vector<8x32xf32>
      %cst_62 = arith.constant 9.99999974E-6 : f32
      %133 = vector.broadcast %cst_62 : f32 to vector<8x1xf32>
      %134 = arith.addf %130, %133 : vector<8x1xf32>
      %135 = math.rsqrt %134 : vector<8x1xf32>
      %136 = vector.broadcast %135 : vector<8x1xf32> to vector<8x32xf32>
      %137 = arith.mulf %132, %136 : vector<8x32xf32>
      %c0_63 = arith.constant 0 : index
      %c0_64 = arith.constant 0 : index
      %138 = vector.load %arg3[%c0_63, %c0_64] : memref<1x32xf32, #tpu.memory_space<vmem>>, vector<1x32xf32>
      %139 = vector.broadcast %138 : vector<1x32xf32> to vector<8x32xf32>
      %140 = arith.mulf %137, %139 : vector<8x32xf32>
      %c0_65 = arith.constant 0 : index
      %c0_66 = arith.constant 0 : index
      %141 = vector.load %arg4[%c0_65, %c0_66] : memref<1x32xf32, #tpu.memory_space<vmem>>, vector<1x32xf32>
      %142 = vector.broadcast %141 : vector<1x32xf32> to vector<8x32xf32>
      %143 = arith.addf %140, %142 : vector<8x32xf32>
      %144 = arith.truncf %143 : vector<8x32xf32> to vector<8x32xbf16>
      %c0_67 = arith.constant 0 : index
      %c0_68 = arith.constant 0 : index
      %145 = vector.load %arg10[%c0_67, %c0_68] : memref<8x32xbf16, #tpu.memory_space<vmem>>, vector<8x32xbf16>
      tpu.vector_store %arg10[%c0_67, %c0_68], %144 {strides = array<i32>} : memref<8x32xbf16, #tpu.memory_space<vmem>>, vector<8x32xbf16>,
      %cst_69 = arith.constant 0.000000e+00 : f32
      %146 = vector.broadcast %cst_69 : f32 to vector<8x32xf32>
      %c0_70 = arith.constant 0 : index
      %c0_71 = arith.constant 0 : index
      %147 = vector.load %arg11[%c0_70, %c0_71] : memref<8x32xf32, #tpu.memory_space<vmem>>, vector<8x32xf32>
      tpu.vector_store %arg11[%c0_70, %c0_71], %146 {strides = array<i32>} : memref<8x32xf32, #tpu.memory_space<vmem>>, vector<8x32xf32>,
    } else {
    }
    %c0 = arith.constant 0 : index
    %c0_1 = arith.constant 0 : index
    %3 = vector.load %arg10[%c0, %c0_1] : memref<8x32xbf16, #tpu.memory_space<vmem>>, vector<8x32xbf16>
    %c0_2 = arith.constant 0 : index
    %c0_3 = arith.constant 0 : index
    %c0_4 = arith.constant 0 : index
    %4 = vector.load %arg5[%c0_2, %c0_3, %c0_4] : memref<1x32x96xbf16, #tpu.memory_space<vmem>>, vector<1x32x96xbf16>
    %5 = vector.shape_cast %4 : vector<1x32x96xbf16> to vector<32x96xbf16>
    %cst = arith.constant dense<0.000000e+00> : vector<8x96xf32>
    %6 = tpu.matmul %3, %5, %cst {dimension_numbers = #tpu.dot_dimension_numbers<[1], [0], [0], [1], [0, 0, 1, 1], [], []>} : vector<8x32xbf16>, vector<32x96xbf16>, vector<8x96xf32> -> vector<8x96xf32>
    %c0_5 = arith.constant 0 : index
    %c0_6 = arith.constant 0 : index
    %c0_7 = arith.constant 0 : index
    %7 = vector.load %arg6[%c0_5, %c0_6, %c0_7] : memref<1x1x96xf32, #tpu.memory_space<vmem>>, vector<1x1x96xf32>
    %8 = vector.shape_cast %7 : vector<1x1x96xf32> to vector<1x96xf32>
    %9 = vector.broadcast %8 : vector<1x96xf32> to vector<8x96xf32>
    %10 = arith.addf %6, %9 : vector<8x96xf32>
    %11 = vector.extract_strided_slice %10 {offsets = [0, 0], sizes = [8, 8], strides = [1, 1]} : vector<8x96xf32> to vector<8x8xf32>
    %12 = vector.extract_strided_slice %10 {offsets = [0, 32], sizes = [8, 8], strides = [1, 1]} : vector<8x96xf32> to vector<8x8xf32>
    %13 = vector.extract_strided_slice %10 {offsets = [0, 64], sizes = [8, 8], strides = [1, 1]} : vector<8x96xf32> to vector<8x8xf32>
    %14 = arith.truncf %11 : vector<8x8xf32> to vector<8x8xbf16>
    %15 = arith.truncf %12 : vector<8x8xf32> to vector<8x8xbf16>
    %cst_8 = arith.constant dense<0.000000e+00> : vector<8x8xf32>
    %16 = tpu.matmul %14, %15, %cst_8 {dimension_numbers = #tpu.dot_dimension_numbers<[1], [1], [0], [0], [0, 0, 1, 0], [], []>} : vector<8x8xbf16>, vector<8x8xbf16>, vector<8x8xf32> -> vector<8x8xf32>
    %cst_9 = arith.constant dense<0xFF800000> : vector<8xf32>
    %17 = vector.multi_reduction <maximumf>, %16, %cst_9 [1] : vector<8x8xf32> to vector<8xf32>
    %18 = vector.shape_cast %17 : vector<8xf32> to vector<8x1xf32>
    %19 = vector.broadcast %18 : vector<8x1xf32> to vector<8x8xf32>
    %20 = arith.subf %16, %19 : vector<8x8xf32>
    %21 = math.exp %20 : vector<8x8xf32>
    %cst_10 = arith.constant dense<0.000000e+00> : vector<8xf32>
    %22 = vector.multi_reduction <add>, %21, %cst_10 [1] : vector<8x8xf32> to vector<8xf32>
    %23 = vector.shape_cast %22 : vector<8xf32> to vector<8x1xf32>
    %24 = tpu.reciprocal %23 {approx = true} : vector<8x1xf32> -> vector<8x1xf32>
    %25 = vector.broadcast %24 : vector<8x1xf32> to vector<8x8xf32>
    %26 = arith.mulf %21, %25 : vector<8x8xf32>
    %27 = arith.truncf %26 : vector<8x8xf32> to vector<8x8xbf16>
    %28 = arith.truncf %13 : vector<8x8xf32> to vector<8x8xbf16>
    %cst_11 = arith.constant dense<0.000000e+00> : vector<8x8xf32>
    %29 = tpu.matmul %27, %28, %cst_11 {dimension_numbers = #tpu.dot_dimension_numbers<[1], [0], [0], [1], [0, 0, 1, 1], [], []>} : vector<8x8xbf16>, vector<8x8xbf16>, vector<8x8xf32> -> vector<8x8xf32>
    %c0_12 = arith.constant 0 : index
    %c0_13 = arith.constant 0 : index
    %30 = vector.load %arg11[%c0_12, %c0_13] : memref<8x32xf32, #tpu.memory_space<vmem>>, vector<8x32xf32>
    %31 = arith.truncf %29 : vector<8x8xf32> to vector<8x8xbf16>
    %c0_14 = arith.constant 0 : index
    %c0_15 = arith.constant 0 : index
    %c0_16 = arith.constant 0 : index
    %32 = vector.load %arg7[%c0_14, %c0_15, %c0_16] : memref<4x8x32xbf16, #tpu.memory_space<vmem>>, vector<1x8x32xbf16>
    %33 = vector.shape_cast %32 : vector<1x8x32xbf16> to vector<8x32xbf16>
    %cst_17 = arith.constant dense<0.000000e+00> : vector<8x32xf32>
    %34 = tpu.matmul %31, %33, %cst_17 {dimension_numbers = #tpu.dot_dimension_numbers<[1], [0], [0], [1], [0, 0, 1, 1], [], []>} : vector<8x8xbf16>, vector<8x32xbf16>, vector<8x32xf32> -> vector<8x32xf32>
    %35 = arith.addf %30, %34 : vector<8x32xf32>
    %c0_18 = arith.constant 0 : index
    %c0_19 = arith.constant 0 : index
    %36 = vector.load %arg11[%c0_18, %c0_19] : memref<8x32xf32, #tpu.memory_space<vmem>>, vector<8x32xf32>
    tpu.vector_store %arg11[%c0_18, %c0_19], %35 {strides = array<i32>} : memref<8x32xf32, #tpu.memory_space<vmem>>, vector<8x32xf32>,
    %37 = vector.extract_strided_slice %10 {offsets = [0, 8], sizes = [8, 8], strides = [1, 1]} : vector<8x96xf32> to vector<8x8xf32>
    %38 = vector.extract_strided_slice %10 {offsets = [0, 40], sizes = [8, 8], strides = [1, 1]} : vector<8x96xf32> to vector<8x8xf32>
    %39 = vector.extract_strided_slice %10 {offsets = [0, 72], sizes = [8, 8], strides = [1, 1]} : vector<8x96xf32> to vector<8x8xf32>
    %40 = arith.truncf %37 : vector<8x8xf32> to vector<8x8xbf16>
    %41 = arith.truncf %38 : vector<8x8xf32> to vector<8x8xbf16>
    %cst_20 = arith.constant dense<0.000000e+00> : vector<8x8xf32>
    %42 = tpu.matmul %40, %41, %cst_20 {dimension_numbers = #tpu.dot_dimension_numbers<[1], [1], [0], [0], [0, 0, 1, 0], [], []>} : vector<8x8xbf16>, vector<8x8xbf16>, vector<8x8xf32> -> vector<8x8xf32>
    %cst_21 = arith.constant dense<0xFF800000> : vector<8xf32>
    %43 = vector.multi_reduction <maximumf>, %42, %cst_21 [1] : vector<8x8xf32> to vector<8xf32>
    %44 = vector.shape_cast %43 : vector<8xf32> to vector<8x1xf32>
    %45 = vector.broadcast %44 : vector<8x1xf32> to vector<8x8xf32>
    %46 = arith.subf %42, %45 : vector<8x8xf32>
    %47 = math.exp %46 : vector<8x8xf32>
    %cst_22 = arith.constant dense<0.000000e+00> : vector<8xf32>
    %48 = vector.multi_reduction <add>, %47, %cst_22 [1] : vector<8x8xf32> to vector<8xf32>
    %49 = vector.shape_cast %48 : vector<8xf32> to vector<8x1xf32>
    %50 = tpu.reciprocal %49 {approx = true} : vector<8x1xf32> -> vector<8x1xf32>
    %51 = vector.broadcast %50 : vector<8x1xf32> to vector<8x8xf32>
    %52 = arith.mulf %47, %51 : vector<8x8xf32>
    %53 = arith.truncf %52 : vector<8x8xf32> to vector<8x8xbf16>
    %54 = arith.truncf %39 : vector<8x8xf32> to vector<8x8xbf16>
    %cst_23 = arith.constant dense<0.000000e+00> : vector<8x8xf32>
    %55 = tpu.matmul %53, %54, %cst_23 {dimension_numbers = #tpu.dot_dimension_numbers<[1], [0], [0], [1], [0, 0, 1, 1], [], []>} : vector<8x8xbf16>, vector<8x8xbf16>, vector<8x8xf32> -> vector<8x8xf32>
    %c0_24 = arith.constant 0 : index
    %c0_25 = arith.constant 0 : index
    %56 = vector.load %arg11[%c0_24, %c0_25] : memref<8x32xf32, #tpu.memory_space<vmem>>, vector<8x32xf32>
    %57 = arith.truncf %55 : vector<8x8xf32> to vector<8x8xbf16>
    %c1 = arith.constant 1 : index
    %c0_26 = arith.constant 0 : index
    %c0_27 = arith.constant 0 : index
    %58 = vector.load %arg7[%c1, %c0_26, %c0_27] : memref<4x8x32xbf16, #tpu.memory_space<vmem>>, vector<1x8x32xbf16>
    %59 = vector.shape_cast %58 : vector<1x8x32xbf16> to vector<8x32xbf16>
    %cst_28 = arith.constant dense<0.000000e+00> : vector<8x32xf32>
    %60 = tpu.matmul %57, %59, %cst_28 {dimension_numbers = #tpu.dot_dimension_numbers<[1], [0], [0], [1], [0, 0, 1, 1], [], []>} : vector<8x8xbf16>, vector<8x32xbf16>, vector<8x32xf32> -> vector<8x32xf32>
    %61 = arith.addf %56, %60 : vector<8x32xf32>
    %c0_29 = arith.constant 0 : index
    %c0_30 = arith.constant 0 : index
    %62 = vector.load %arg11[%c0_29, %c0_30] : memref<8x32xf32, #tpu.memory_space<vmem>>, vector<8x32xf32>
    tpu.vector_store %arg11[%c0_29, %c0_30], %61 {strides = array<i32>} : memref<8x32xf32, #tpu.memory_space<vmem>>, vector<8x32xf32>,
    %63 = vector.extract_strided_slice %10 {offsets = [0, 16], sizes = [8, 8], strides = [1, 1]} : vector<8x96xf32> to vector<8x8xf32>
    %64 = vector.extract_strided_slice %10 {offsets = [0, 48], sizes = [8, 8], strides = [1, 1]} : vector<8x96xf32> to vector<8x8xf32>
    %65 = vector.extract_strided_slice %10 {offsets = [0, 80], sizes = [8, 8], strides = [1, 1]} : vector<8x96xf32> to vector<8x8xf32>
    %66 = arith.truncf %63 : vector<8x8xf32> to vector<8x8xbf16>
    %67 = arith.truncf %64 : vector<8x8xf32> to vector<8x8xbf16>
    %cst_31 = arith.constant dense<0.000000e+00> : vector<8x8xf32>
    %68 = tpu.matmul %66, %67, %cst_31 {dimension_numbers = #tpu.dot_dimension_numbers<[1], [1], [0], [0], [0, 0, 1, 0], [], []>} : vector<8x8xbf16>, vector<8x8xbf16>, vector<8x8xf32> -> vector<8x8xf32>
    %cst_32 = arith.constant dense<0xFF800000> : vector<8xf32>
    %69 = vector.multi_reduction <maximumf>, %68, %cst_32 [1] : vector<8x8xf32> to vector<8xf32>
    %70 = vector.shape_cast %69 : vector<8xf32> to vector<8x1xf32>
    %71 = vector.broadcast %70 : vector<8x1xf32> to vector<8x8xf32>
    %72 = arith.subf %68, %71 : vector<8x8xf32>
    %73 = math.exp %72 : vector<8x8xf32>
    %cst_33 = arith.constant dense<0.000000e+00> : vector<8xf32>
    %74 = vector.multi_reduction <add>, %73, %cst_33 [1] : vector<8x8xf32> to vector<8xf32>
    %75 = vector.shape_cast %74 : vector<8xf32> to vector<8x1xf32>
    %76 = tpu.reciprocal %75 {approx = true} : vector<8x1xf32> -> vector<8x1xf32>
    %77 = vector.broadcast %76 : vector<8x1xf32> to vector<8x8xf32>
    %78 = arith.mulf %73, %77 : vector<8x8xf32>
    %79 = arith.truncf %78 : vector<8x8xf32> to vector<8x8xbf16>
    %80 = arith.truncf %65 : vector<8x8xf32> to vector<8x8xbf16>
    %cst_34 = arith.constant dense<0.000000e+00> : vector<8x8xf32>
    %81 = tpu.matmul %79, %80, %cst_34 {dimension_numbers = #tpu.dot_dimension_numbers<[1], [0], [0], [1], [0, 0, 1, 1], [], []>} : vector<8x8xbf16>, vector<8x8xbf16>, vector<8x8xf32> -> vector<8x8xf32>
    %c0_35 = arith.constant 0 : index
    %c0_36 = arith.constant 0 : index
    %82 = vector.load %arg11[%c0_35, %c0_36] : memref<8x32xf32, #tpu.memory_space<vmem>>, vector<8x32xf32>
    %83 = arith.truncf %81 : vector<8x8xf32> to vector<8x8xbf16>
    %c2 = arith.constant 2 : index
    %c0_37 = arith.constant 0 : index
    %c0_38 = arith.constant 0 : index
    %84 = vector.load %arg7[%c2, %c0_37, %c0_38] : memref<4x8x32xbf16, #tpu.memory_space<vmem>>, vector<1x8x32xbf16>
    %85 = vector.shape_cast %84 : vector<1x8x32xbf16> to vector<8x32xbf16>
    %cst_39 = arith.constant dense<0.000000e+00> : vector<8x32xf32>
    %86 = tpu.matmul %83, %85, %cst_39 {dimension_numbers = #tpu.dot_dimension_numbers<[1], [0], [0], [1], [0, 0, 1, 1], [], []>} : vector<8x8xbf16>, vector<8x32xbf16>, vector<8x32xf32> -> vector<8x32xf32>
    %87 = arith.addf %82, %86 : vector<8x32xf32>
    %c0_40 = arith.constant 0 : index
    %c0_41 = arith.constant 0 : index
    %88 = vector.load %arg11[%c0_40, %c0_41] : memref<8x32xf32, #tpu.memory_space<vmem>>, vector<8x32xf32>
    tpu.vector_store %arg11[%c0_40, %c0_41], %87 {strides = array<i32>} : memref<8x32xf32, #tpu.memory_space<vmem>>, vector<8x32xf32>,
    %89 = vector.extract_strided_slice %10 {offsets = [0, 24], sizes = [8, 8], strides = [1, 1]} : vector<8x96xf32> to vector<8x8xf32>
    %90 = vector.extract_strided_slice %10 {offsets = [0, 56], sizes = [8, 8], strides = [1, 1]} : vector<8x96xf32> to vector<8x8xf32>
    %91 = vector.extract_strided_slice %10 {offsets = [0, 88], sizes = [8, 8], strides = [1, 1]} : vector<8x96xf32> to vector<8x8xf32>
    %92 = arith.truncf %89 : vector<8x8xf32> to vector<8x8xbf16>
    %93 = arith.truncf %90 : vector<8x8xf32> to vector<8x8xbf16>
    %cst_42 = arith.constant dense<0.000000e+00> : vector<8x8xf32>
    %94 = tpu.matmul %92, %93, %cst_42 {dimension_numbers = #tpu.dot_dimension_numbers<[1], [1], [0], [0], [0, 0, 1, 0], [], []>} : vector<8x8xbf16>, vector<8x8xbf16>, vector<8x8xf32> -> vector<8x8xf32>
    %cst_43 = arith.constant dense<0xFF800000> : vector<8xf32>
    %95 = vector.multi_reduction <maximumf>, %94, %cst_43 [1] : vector<8x8xf32> to vector<8xf32>
    %96 = vector.shape_cast %95 : vector<8xf32> to vector<8x1xf32>
    %97 = vector.broadcast %96 : vector<8x1xf32> to vector<8x8xf32>
    %98 = arith.subf %94, %97 : vector<8x8xf32>
    %99 = math.exp %98 : vector<8x8xf32>
    %cst_44 = arith.constant dense<0.000000e+00> : vector<8xf32>
    %100 = vector.multi_reduction <add>, %99, %cst_44 [1] : vector<8x8xf32> to vector<8xf32>
    %101 = vector.shape_cast %100 : vector<8xf32> to vector<8x1xf32>
    %102 = tpu.reciprocal %101 {approx = true} : vector<8x1xf32> -> vector<8x1xf32>
    %103 = vector.broadcast %102 : vector<8x1xf32> to vector<8x8xf32>
    %104 = arith.mulf %99, %103 : vector<8x8xf32>
    %105 = arith.truncf %104 : vector<8x8xf32> to vector<8x8xbf16>
    %106 = arith.truncf %91 : vector<8x8xf32> to vector<8x8xbf16>
    %cst_45 = arith.constant dense<0.000000e+00> : vector<8x8xf32>
    %107 = tpu.matmul %105, %106, %cst_45 {dimension_numbers = #tpu.dot_dimension_numbers<[1], [0], [0], [1], [0, 0, 1, 1], [], []>} : vector<8x8xbf16>, vector<8x8xbf16>, vector<8x8xf32> -> vector<8x8xf32>
    %c0_46 = arith.constant 0 : index
    %c0_47 = arith.constant 0 : index
    %108 = vector.load %arg11[%c0_46, %c0_47] : memref<8x32xf32, #tpu.memory_space<vmem>>, vector<8x32xf32>
    %109 = arith.truncf %107 : vector<8x8xf32> to vector<8x8xbf16>
    %c3 = arith.constant 3 : index
    %c0_48 = arith.constant 0 : index
    %c0_49 = arith.constant 0 : index
    %110 = vector.load %arg7[%c3, %c0_48, %c0_49] : memref<4x8x32xbf16, #tpu.memory_space<vmem>>, vector<1x8x32xbf16>
    %111 = vector.shape_cast %110 : vector<1x8x32xbf16> to vector<8x32xbf16>
    %cst_50 = arith.constant dense<0.000000e+00> : vector<8x32xf32>
    %112 = tpu.matmul %109, %111, %cst_50 {dimension_numbers = #tpu.dot_dimension_numbers<[1], [0], [0], [1], [0, 0, 1, 1], [], []>} : vector<8x8xbf16>, vector<8x32xbf16>, vector<8x32xf32> -> vector<8x32xf32>
    %113 = arith.addf %108, %112 : vector<8x32xf32>
    %c0_51 = arith.constant 0 : index
    %c0_52 = arith.constant 0 : index
    %114 = vector.load %arg11[%c0_51, %c0_52] : memref<8x32xf32, #tpu.memory_space<vmem>>, vector<8x32xf32>
    tpu.vector_store %arg11[%c0_51, %c0_52], %113 {strides = array<i32>} : memref<8x32xf32, #tpu.memory_space<vmem>>, vector<8x32xf32>,
    %c0_i32_53 = arith.constant 0 : i32
    %115 = arith.cmpi eq, %arg1, %c0_i32_53 : i32
    %116 = arith.extui %115 : i1 to i32
    %c0_i32_54 = arith.constant 0 : i32
    %117 = arith.cmpi ne, %116, %c0_i32_54 : i32
    scf.if %117 {
      %c0_55 = arith.constant 0 : index
      %c0_56 = arith.constant 0 : index
      %c0_57 = arith.constant 0 : index
      %118 = vector.load %arg2[%c0_55, %c0_56, %c0_57] : memref<1x8x32xf32, #tpu.memory_space<vmem>>, vector<1x8x32xf32>
      %119 = vector.shape_cast %118 : vector<1x8x32xf32> to vector<8x32xf32>
      %c0_58 = arith.constant 0 : index
      %c0_59 = arith.constant 0 : index
      %120 = vector.load %arg11[%c0_58, %c0_59] : memref<8x32xf32, #tpu.memory_space<vmem>>, vector<8x32xf32>
      %121 = arith.addf %119, %120 : vector<8x32xf32>
      %c0_60 = arith.constant 0 : index
      %c0_61 = arith.constant 0 : index
      %122 = vector.load %arg8[%c0_60, %c0_61] : memref<1x32xf32, #tpu.memory_space<vmem>>, vector<1x32xf32>
      %123 = vector.broadcast %122 : vector<1x32xf32> to vector<8x32xf32>
      %124 = arith.addf %121, %123 : vector<8x32xf32>
      %c0_62 = arith.constant 0 : index
      %c0_63 = arith.constant 0 : index
      %c0_64 = arith.constant 0 : index
      %125 = vector.load %arg9[%c0_62, %c0_63, %c0_64] : memref<1x8x32xf32, #tpu.memory_space<vmem>>, vector<1x8x32xf32>
      %126 = vector.shape_cast %125 : vector<1x8x32xf32> to vector<8x32xf32>
      %127 = vector.shape_cast %124 : vector<8x32xf32> to vector<1x8x32xf32>
      tpu.vector_store %arg9[%c0_62, %c0_63, %c0_64], %127 {strides = array<i32>} : memref<1x8x32xf32, #tpu.memory_space<vmem>>, vector<1x8x32xf32>,
    } else {
    }
    return
  }
  func.func @transform_0(%arg0: i32, %arg1: i32) -> (i32, i32, i32) {
    %c0_i32 = arith.constant 0 : i32
    %c0_i32_0 = arith.constant 0 : i32
    %c0_i32_1 = arith.constant 0 : i32
    return %arg0, %c0_i32, %c0_i32_0 : i32, i32, i32
  }
  func.func @transform_1(%arg0: i32, %arg1: i32) -> (i32, i32) {
    %c0_i32 = arith.constant 0 : i32
    %c0_i32_0 = arith.constant 0 : i32
    %c0_i32_1 = arith.constant 0 : i32
    return %c0_i32, %c0_i32_0 : i32, i32
  }
  func.func @transform_2(%arg0: i32, %arg1: i32) -> (i32, i32) {
    %c0_i32 = arith.constant 0 : i32
    %c0_i32_0 = arith.constant 0 : i32
    %c0_i32_1 = arith.constant 0 : i32
    return %c0_i32, %c0_i32_0 : i32, i32
  }
  func.func @transform_3(%arg0: i32, %arg1: i32) -> (i32, i32, i32) {
    %c0_i32 = arith.constant 0 : i32
    %c0_i32_0 = arith.constant 0 : i32
    %c0_i32_1 = arith.constant 0 : i32
    return %arg1, %c0_i32, %c0_i32_0 : i32, i32, i32
  }
  func.func @transform_4(%arg0: i32, %arg1: i32) -> (i32, i32, i32) {
    %c0_i32 = arith.constant 0 : i32
    %c0_i32_0 = arith.constant 0 : i32
    %c0_i32_1 = arith.constant 0 : i32
    return %arg1, %c0_i32, %c0_i32_0 : i32, i32, i32
  }
  func.func @transform_5(%arg0: i32, %arg1: i32) -> (i32, i32, i32) {
    %c0_i32 = arith.constant 0 : i32
    %c0_i32_0 = arith.constant 0 : i32
    %c0_i32_1 = arith.constant 0 : i32
    return %arg1, %c0_i32, %c0_i32_0 : i32, i32, i32
  }
  func.func @transform_6(%arg0: i32, %arg1: i32) -> (i32, i32) {
    %c0_i32 = arith.constant 0 : i32
    %c0_i32_0 = arith.constant 0 : i32
    %c0_i32_1 = arith.constant 0 : i32
    return %c0_i32, %c0_i32_0 : i32, i32
  }
  func.func @transform_7(%arg0: i32, %arg1: i32) -> (i32, i32, i32) {
    %c0_i32 = arith.constant 0 : i32
    %c0_i32_0 = arith.constant 0 : i32
    %c0_i32_1 = arith.constant 0 : i32
    return %arg0, %c0_i32, %c0_i32_0 : i32, i32, i32
  }
}

</mosaic_0001>

<llo_original>
// kernel: tpu_custom_call.1
$region0: #{tpu_custom_call.1}
  #allocation0 [shape = 'u32[]', space=smem, size = 0x4, offset = 0x4, fixed_abs, tag = 'smem constant byte address 0x4 - core index']
  #allocation1 [shape = 'u32[144,128]{1,0:T(1,128)}', space=vmem, size = 0x12000, scoped, tag = 'internal scratch']
  #allocation2 [shape = 'bf16[8,32]{1,0:T(8,128)(2,1)}', space=vmem, size = 0x800, scoped, tag = 'scratch operand']
  #allocation3 [shape = 'f32[8,32]{1,0:T(8,128)}', space=vmem, size = 0x1000, scoped, tag = 'scratch operand']
  %s0 = inlined_call_operand.hbm [shape: f32[2,8,32], index: 0, kind: input, shape index: {}]
  %s1 = inlined_call_operand.vmem [shape: f32[1,32], index: 1, kind: input, shape index: {}]
  %s2 = inlined_call_operand.vmem [shape: f32[1,32], index: 2, kind: input, shape index: {}]
  %s3 = inlined_call_operand.hbm [shape: bf16[1,32,96], index: 3, kind: input, shape index: {}]
  %s4 = inlined_call_operand.hbm [shape: f32[1,1,96], index: 4, kind: input, shape index: {}]
  %s5 = inlined_call_operand.vmem [shape: bf16[4,8,32], index: 5, kind: input, shape index: {}]
  %s6 = inlined_call_operand.vmem [shape: f32[1,32], index: 6, kind: input, shape index: {}]
  %s7 = inlined_call_operand.hbm [shape: f32[2,8,32], index: 7, kind: output, shape index: {}]
  %s8 = sld [smem:[#allocation0]]
  $region81: #{tpu_custom_call.1} parent=0
    _
  %s10 = ssub.s32 1, %s8
  %s11 = scalar_select 0, %s10, %s8
  $region1: #{tpu_custom_call.1} parent=0
    #allocation4 [shape = 'u8[8192]{0}', space=vmem, size = 0x2000, scoped, tag = 'input window, operand 0']
    #allocation5 [shape = 's32[2]{0}', space=sflag, size = 0x8, scoped, tag = 'scoped memory for tpu_custom_call.1']
    #allocation6 [shape = 's32[2]{0}', space=sflag, size = 0x8, scoped, tag = 'scoped memory for tpu_custom_call.1']
    #allocation7 [shape = 'u8[8192]{0}', space=vmem, size = 0x2000, scoped, tag = 'input window, operand 3, single buffered']
    #allocation8 [shape = 's32[1]{0}', space=sflag, size = 0x4, scoped, tag = 'scoped memory for tpu_custom_call.1']
    #allocation9 [shape = 'u8[512]{0}', space=vmem, size = 0x400, scoped, tag = 'input window, operand 4, single buffered']
    #allocation10 [shape = 'u8[8192]{0}', space=vmem, size = 0x2000, scoped, tag = 'output window, operand 0']
    %12 = vsyncpa [#allocation5], 0
    %s13 = scalar_lea.sflag [#allocation5], 1
    %14 = vsyncpa %s13, 0
    %15 = vsyncpa [#allocation8], 0
    %16 = vsyncpa [#allocation6], 0
    %s17 = scalar_lea.sflag [#allocation6], 1
    %18 = vsyncpa %s17, 0
    loop: start=0, step=1, limit=4
    $region2: #{tpu_custom_call.1} parent=1 // loop_pre_header
      _
    $region3: #{tpu_custom_call.1} parent=1 // loop_header
      %s20 = sphi 0, %s24
      %p21 = scmp.ge.s32.totalorder %s20, 4
      %s27 = sphi 0, %s39
      %s28 = sphi 0, %s35
      %s29 = sphi 0, %s27
      %s30 = sphi 0, %s28
      %s31 = sphi 0, %s29
      %s32 = sphi 0, %s30
      %s42 = sphi 0, %s44
      %s45 = sphi 0, %s42
      %s46 = sphi 0, %s45
      %s62 = sphi 0, %s46
      %s66 = sphi 0, %s66
      %s68 = sphi 0, %s66
      %s69 = sphi 0, %s68
      %s83 = sphi 0, %s69
      %s87 = sphi 0, %s87
      %s89 = sphi 0, %s87
      %s90 = sphi 0, %s89
      %s104 = sphi 0, %s90
      %s110 = sphi 0, %s112
      %s113 = sphi 0, %s110
      %s114 = sphi 0, %s113
      %s130 = sphi 0, %s114
      %s136 = sphi 0, %s138
      %s139 = sphi 0, %s136
      %s140 = sphi 0, %s139
      %s156 = sphi 0, %s140
      %s162 = sphi 0, %s164
      %s165 = sphi 0, %s162
      %s166 = sphi 0, %s165
      %s182 = sphi 0, %s166
      %s186 = sphi 0, %s186
      %s188 = sphi 0, %s186
      %s189 = sphi 0, %s188
      %s203 = sphi 0, %s189
      %s209 = sphi 0, %s211
      %s212 = sphi 0, %s209
      %s213 = sphi 0, %s212
      %s229 = sphi 0, %s213
    $region4: #{tpu_custom_call.1} parent=1 // loop_header_branch
      %23 = sbr.rel (%p21) target = $region8
    $region5: #{tpu_custom_call.1} parent=1 // loop_body
      %s25 = ssub.s32 %s20, 1
      %s26 = ssub.s32 %s20, 2
      %s33 = sadd.s32 1, %s28
      %p34 = scmp.ge.s32.totalorder %s33, 1
      %s35 = scalar_select %p34, 0, %s33
      %s36 = sadd.s32 1, %s27
      %s37 = scalar_select %p34, %s36, %s27
      %p38 = scmp.ge.s32.totalorder %s37, 2
      %s39 = scalar_select %p38, 0, %s37
      %s40 = ssub.s32 %s27, %s39
      %p41 = scmp.eq.s32.totalorder %s40, 0
      %s43 = sadd.s32 %s42, 1
      %s44 = scalar_select %p41, %s42, %s43
      %p47 = pneg %p41
      %p48 = scmp.eq.s32.totalorder %s20, 1
      %p49 = por %p47, %p48
      %p50 = scmp.ne.s32.totalorder %s42, %s45
      %p51 = scmp.eq.s32.totalorder %s20, 0
      %p52 = por %p50, %p51
      %p53 = scmp.ne.s32.totalorder %s42, %s45
      %p54 = scmp.eq.s32.totalorder %s25, 1
      %p55 = por %p53, %p54
      %p56 = scmp.ne.s32.totalorder %s45, %s46
      %p57 = scmp.eq.s32.totalorder %s25, 0
      %p58 = por %p56, %p57
      %p59 = scmp.ne.s32.totalorder %s45, %s46
      %p60 = scmp.eq.s32.totalorder %s26, 1
      %p61 = por %p59, %p60
      %p63 = scmp.ne.s32.totalorder %s46, %s62
      %p64 = scmp.eq.s32.totalorder %s26, 0
      %p65 = por %p63, %p64
      %s67 = sadd.s32 %s66, 1
      %p70 = scmp.eq.s32.totalorder %s20, 1
      %p71 = scmp.ne.s32.totalorder %s66, %s68
      %p72 = scmp.eq.s32.totalorder %s20, 0
      %p73 = por %p71, %p72
      %p74 = scmp.ne.s32.totalorder %s66, %s68
      %p75 = scmp.eq.s32.totalorder %s25, 1
      %p76 = por %p74, %p75
      %p77 = scmp.ne.s32.totalorder %s68, %s69
      %p78 = scmp.eq.s32.totalorder %s25, 0
      %p79 = por %p77, %p78
      %p80 = scmp.ne.s32.totalorder %s68, %s69
      %p81 = scmp.eq.s32.totalorder %s26, 1
      %p82 = por %p80, %p81
      %p84 = scmp.ne.s32.totalorder %s69, %s83
      %p85 = scmp.eq.s32.totalorder %s26, 0
      %p86 = por %p84, %p85
      %s88 = sadd.s32 %s87, 1
      %p91 = scmp.eq.s32.totalorder %s20, 1
      %p92 = scmp.ne.s32.totalorder %s87, %s89
      %p93 = scmp.eq.s32.totalorder %s20, 0
      %p94 = por %p92, %p93
      %p95 = scmp.ne.s32.totalorder %s87, %s89
      %p96 = scmp.eq.s32.totalorder %s25, 1
      %p97 = por %p95, %p96
      %p98 = scmp.ne.s32.totalorder %s89, %s90
      %p99 = scmp.eq.s32.totalorder %s25, 0
      %p100 = por %p98, %p99
      %p101 = scmp.ne.s32.totalorder %s89, %s90
      %p102 = scmp.eq.s32.totalorder %s26, 1
      %p103 = por %p101, %p102
      %p105 = scmp.ne.s32.totalorder %s90, %s104
      %p106 = scmp.eq.s32.totalorder %s26, 0
      %p107 = por %p105, %p106
      %s108 = ssub.s32 %s28, %s35
      %p109 = scmp.eq.s32.totalorder %s108, 0
      %s111 = sadd.s32 %s110, 1
      %s112 = scalar_select %p109, %s110, %s111
      %p115 = pneg %p109
      %p116 = scmp.eq.s32.totalorder %s20, 1
      %p117 = por %p115, %p116
      %p118 = scmp.ne.s32.totalorder %s110, %s113
      %p119 = scmp.eq.s32.totalorder %s20, 0
      %p120 = por %p118, %p119
      %p121 = scmp.ne.s32.totalorder %s110, %s113
      %p122 = scmp.eq.s32.totalorder %s25, 1
      %p123 = por %p121, %p122
      %p124 = scmp.ne.s32.totalorder %s113, %s114
      %p125 = scmp.eq.s32.totalorder %s25, 0
      %p126 = por %p124, %p125
      %p127 = scmp.ne.s32.totalorder %s113, %s114
      %p128 = scmp.eq.s32.totalorder %s26, 1
      %p129 = por %p127, %p128
      %p131 = scmp.ne.s32.totalorder %s114, %s130
      %p132 = scmp.eq.s32.totalorder %s26, 0
      %p133 = por %p131, %p132
      %s134 = ssub.s32 %s28, %s35
      %p135 = scmp.eq.s32.totalorder %s134, 0
      %s137 = sadd.s32 %s136, 1
      %s138 = scalar_select %p135, %s136, %s137
      %p141 = pneg %p135
      %p142 = scmp.eq.s32.totalorder %s20, 1
      %p143 = por %p141, %p142
      %p144 = scmp.ne.s32.totalorder %s136, %s139
      %p145 = scmp.eq.s32.totalorder %s20, 0
      %p146 = por %p144, %p145
      %p147 = scmp.ne.s32.totalorder %s136, %s139
      %p148 = scmp.eq.s32.totalorder %s25, 1
      %p149 = por %p147, %p148
      %p150 = scmp.ne.s32.totalorder %s139, %s140
      %p151 = scmp.eq.s32.totalorder %s25, 0
      %p152 = por %p150, %p151
      %p153 = scmp.ne.s32.totalorder %s139, %s140
      %p154 = scmp.eq.s32.totalorder %s26, 1
      %p155 = por %p153, %p154
      %p157 = scmp.ne.s32.totalorder %s140, %s156
      %p158 = scmp.eq.s32.totalorder %s26, 0
      %p159 = por %p157, %p158
      %s160 = ssub.s32 %s28, %s35
      %p161 = scmp.eq.s32.totalorder %s160, 0
      %s163 = sadd.s32 %s162, 1
      %s164 = scalar_select %p161, %s162, %s163
      %p167 = pneg %p161
      %p168 = scmp.eq.s32.totalorder %s20, 1
      %p169 = por %p167, %p168
      %p170 = scmp.ne.s32.totalorder %s162, %s165
      %p171 = scmp.eq.s32.totalorder %s20, 0
      %p172 = por %p170, %p171
      %p173 = scmp.ne.s32.totalorder %s162, %s165
      %p174 = scmp.eq.s32.totalorder %s25, 1
      %p175 = por %p173, %p174
      %p176 = scmp.ne.s32.totalorder %s165, %s166
      %p177 = scmp.eq.s32.totalorder %s25, 0
      %p178 = por %p176, %p177
      %p179 = scmp.ne.s32.totalorder %s165, %s166
      %p180 = scmp.eq.s32.totalorder %s26, 1
      %p181 = por %p179, %p180
      %p183 = scmp.ne.s32.totalorder %s166, %s182
      %p184 = scmp.eq.s32.totalorder %s26, 0
      %p185 = por %p183, %p184
      %s187 = sadd.s32 %s186, 1
      %p190 = scmp.eq.s32.totalorder %s20, 1
      %p191 = scmp.ne.s32.totalorder %s186, %s188
      %p192 = scmp.eq.s32.totalorder %s20, 0
      %p193 = por %p191, %p192
      %p194 = scmp.ne.s32.totalorder %s186, %s188
      %p195 = scmp.eq.s32.totalorder %s25, 1
      %p196 = por %p194, %p195
      %p197 = scmp.ne.s32.totalorder %s188, %s189
      %p198 = scmp.eq.s32.totalorder %s25, 0
      %p199 = por %p197, %p198
      %p200 = scmp.ne.s32.totalorder %s188, %s189
      %p201 = scmp.eq.s32.totalorder %s26, 1
      %p202 = por %p200, %p201
      %p204 = scmp.ne.s32.totalorder %s189, %s203
      %p205 = scmp.eq.s32.totalorder %s26, 0
      %p206 = por %p204, %p205
      %s207 = ssub.s32 %s27, %s39
      %p208 = scmp.eq.s32.totalorder %s207, 0
      %s210 = sadd.s32 %s209, 1
      %s211 = scalar_select %p208, %s209, %s210
      %p214 = pneg %p208
      %p215 = scmp.eq.s32.totalorder %s20, 1
      %p216 = por %p214, %p215
      %p217 = scmp.ne.s32.totalorder %s209, %s212
      %p218 = scmp.eq.s32.totalorder %s20, 0
      %p219 = por %p217, %p218
      %p220 = scmp.ne.s32.totalorder %s209, %s212
      %p221 = scmp.eq.s32.totalorder %s25, 1
      %p222 = por %p220, %p221
      %p223 = scmp.ne.s32.totalorder %s212, %s213
      %p224 = scmp.eq.s32.totalorder %s25, 0
      %p225 = por %p223, %p224
      %p226 = scmp.ne.s32.totalorder %s212, %s213
      %p227 = scmp.eq.s32.totalorder %s26, 1
      %p228 = por %p226, %p227
      %p230 = scmp.ne.s32.totalorder %s213, %s229
      %p231 = scmp.eq.s32.totalorder %s26, 0
      %p232 = por %p230, %p231
      %p233 = scmp.le.s32.totalorder 1, %s20
      %p234 = scmp.lt.s32.totalorder %s20, 3
      %p235 = pnand %p233, %p234
      %p236 = pneg %p235
      // Predicated region
      $region9: #{tpu_custom_call.1} parent=5 // pred_check
        _
      $region10: #{tpu_custom_call.1} parent=5 // pred_check_branch
        %238 = sbr.rel (%p235) target = $region12
      $region11: #{tpu_custom_call.1} parent=5 // pred_region
        %s239 = ssub.s32 %s20, 1
        // Predicated region
        $region13: #{tpu_custom_call.1} parent=11 // pred_check
          %p240 = pneg %p79
        $region14: #{tpu_custom_call.1} parent=11 // pred_check_branch
          %242 = sbr.rel (%p240) target = $region16
        $region15: #{tpu_custom_call.1} parent=11 // pred_region
          _
        $region16: #{tpu_custom_call.1} parent=11 // pred_fallthru
          _
        // Predicated region
        $region17: #{tpu_custom_call.1} parent=11 // pred_check
          %p243 = pneg %p100
        $region18: #{tpu_custom_call.1} parent=11 // pred_check_branch
          %245 = sbr.rel (%p243) target = $region20
        $region19: #{tpu_custom_call.1} parent=11 // pred_region
          _
        $region20: #{tpu_custom_call.1} parent=11 // pred_fallthru
          _
        // Predicated region
        $region21: #{tpu_custom_call.1} parent=11 // pred_check
          %p246 = pneg %p126
        $region22: #{tpu_custom_call.1} parent=11 // pred_check_branch
          %248 = sbr.rel (%p246) target = $region24
        $region23: #{tpu_custom_call.1} parent=11 // pred_region
          %s250 = ssub.s32 256, 256
          %251 = vsyncadd [#allocation8], %s250
          %s252 = smul.addr %s30, 4
          %s253 = smul.addr %s252, 64
          %s254 = scalar_lea.hbm %s3, %s253
          %s255 = sshll.u32 [#allocation7], 4
          %s256 = int_to_ptr.vmem [resolvable:$true] %s255
          %261 = dma.hbm_to_vmem [thread:$0]  %s254, 256, %s256, [#allocation8], 64, 64, 4
        $region24: #{tpu_custom_call.1} parent=11 // pred_fallthru
          _
        // Predicated region
        $region25: #{tpu_custom_call.1} parent=11 // pred_check
          %p262 = pneg %p152
        $region26: #{tpu_custom_call.1} parent=11 // pred_check_branch
          %264 = sbr.rel (%p262) target = $region28
        $region27: #{tpu_custom_call.1} parent=11 // pred_region
          %s266 = ssub.s32 16, 16
          %267 = vsyncadd [#allocation8], %s266
          %s268 = smul.addr %s30, 16
          %s269 = scalar_lea.hbm %s4, %s268
          %s271 = sshll.u32 [#allocation9], 4
          %s272 = int_to_ptr.vmem [resolvable:$true] %s271
          %274 = dma.hbm_to_vmem [thread:$0]  %s269, 16, %s272, [#allocation8]
        $region28: #{tpu_custom_call.1} parent=11 // pred_fallthru
          _
        // Predicated region
        $region29: #{tpu_custom_call.1} parent=11 // pred_check
          %p275 = pneg %p178
        $region30: #{tpu_custom_call.1} parent=11 // pred_check_branch
          %277 = sbr.rel (%p275) target = $region32
        $region31: #{tpu_custom_call.1} parent=11 // pred_region
          %s278 = smul.u32 4, %s30
          %p279 = scmp.lt.s32.totalorder %s278, 3
          %s280 = scalar_select %p279, %s278, 3
          %s281 = smul.addr %s280, 4
          %s282 = scalar_lea.vmem %s5, %s281
          %s283 = smul.u32 4, %s30
        $region32: #{tpu_custom_call.1} parent=11 // pred_fallthru
          _
        // Predicated region
        $region33: #{tpu_custom_call.1} parent=11 // pred_check
          %p284 = pneg %p199
        $region34: #{tpu_custom_call.1} parent=11 // pred_check_branch
          %286 = sbr.rel (%p284) target = $region36
        $region35: #{tpu_custom_call.1} parent=11 // pred_region
          _
        $region36: #{tpu_custom_call.1} parent=11 // pred_fallthru
          _
      $region12: #{tpu_custom_call.1} parent=5 // pred_fallthru
        _
      %p287 = scmp.lt.s32.totalorder %s20, 2
      // Predicated region
      $region37: #{tpu_custom_call.1} parent=5 // pred_check
        %p288 = pneg %p287
      $region38: #{tpu_custom_call.1} parent=5 // pred_check_branch
        %290 = sbr.rel (%p288) target = $region40
      $region39: #{tpu_custom_call.1} parent=5 // pred_region
        // Predicated region
        $region41: #{tpu_custom_call.1} parent=39 // pred_check
          %p291 = pneg %p52
        $region42: #{tpu_custom_call.1} parent=39 // pred_check_branch
          %293 = sbr.rel (%p291) target = $region44
        $region43: #{tpu_custom_call.1} parent=39 // pred_region
          %s294 = sand.u32 %s42, 1
          %s295 = scalar_lea.sflag [#allocation5], %s294
          %s296 = sand.u32 %s42, 1
          %s297 = smul.addr %s296, 8
          %s298 = scalar_lea.vmem [#allocation4], %s297
          %s300 = ssub.s32 128, 128
          %301 = vsyncadd %s295, %s300
          %s302 = smul.addr %s27, 128
          %s303 = scalar_lea.hbm %s0, %s302
          %s305 = sshll.u32 %s298, 4
          %s306 = int_to_ptr.vmem [resolvable:$true] %s305
          %308 = dma.hbm_to_vmem [thread:$0]  %s303, 128, %s306, %s295
        $region44: #{tpu_custom_call.1} parent=39 // pred_fallthru
          _
      $region40: #{tpu_custom_call.1} parent=5 // pred_fallthru
        _
      %p309 = scmp.le.s32.totalorder 1, %s20
      %p310 = scmp.lt.s32.totalorder %s20, 3
      %p311 = pnand %p309, %p310
      %p312 = pneg %p311
      // Predicated region
      $region45: #{tpu_custom_call.1} parent=5 // pred_check
        _
      $region46: #{tpu_custom_call.1} parent=5 // pred_check_branch
        %314 = sbr.rel (%p311) target = $region48
      $region47: #{tpu_custom_call.1} parent=5 // pred_region
        %s315 = ssub.s32 %s20, 1
        %s316 = sand.u32 %s45, 1
        %s317 = scalar_lea.sflag [#allocation5], %s316
        %s318 = sand.u32 %s45, 1
        %s319 = smul.addr %s318, 8
        %s320 = scalar_lea.vmem [#allocation4], %s319
        // Predicated region
        $region49: #{tpu_custom_call.1} parent=47 // pred_check
          %p321 = pneg %p58
        $region50: #{tpu_custom_call.1} parent=47 // pred_check_branch
          %323 = sbr.rel (%p321) target = $region52
        $region51: #{tpu_custom_call.1} parent=47 // pred_region
          %324 = dma.done %s317, 128
        $region52: #{tpu_custom_call.1} parent=47 // pred_fallthru
          _
        // Predicated region
        $region53: #{tpu_custom_call.1} parent=47 // pred_check
          %p325 = pneg %p126
        $region54: #{tpu_custom_call.1} parent=47 // pred_check_branch
          %327 = sbr.rel (%p325) target = $region56
        $region55: #{tpu_custom_call.1} parent=47 // pred_region
          %328 = dma.done [#allocation8], 256
        $region56: #{tpu_custom_call.1} parent=47 // pred_fallthru
          _
        // Predicated region
        $region57: #{tpu_custom_call.1} parent=47 // pred_check
          %p329 = pneg %p152
        $region58: #{tpu_custom_call.1} parent=47 // pred_check_branch
          %331 = sbr.rel (%p329) target = $region60
        $region59: #{tpu_custom_call.1} parent=47 // pred_region
          %332 = dma.done [#allocation8], 16
        $region60: #{tpu_custom_call.1} parent=47 // pred_fallthru
          _
        %s333 = sand.u32 %s45, 1
        %s334 = scalar_lea.sflag [#allocation5], %s333
        %s335 = sand.u32 %s45, 1
        %s336 = smul.addr %s335, 8
        %s337 = scalar_lea.vmem [#allocation4], %s336
        %p338 = pneg %p58
        %p339 = pneg %p55
        %p340 = pneg %p79
        %p341 = pneg %p76
        %p342 = pneg %p100
        %p343 = pneg %p97
        %p344 = pneg %p126
        %p345 = pneg %p123
        %p346 = pneg %p152
        %p347 = pneg %p149
        %s348 = smul.u32 4, %s30
        %p349 = scmp.lt.s32.totalorder %s348, 3
        %s350 = scalar_select %p349, %s348, 3
        %s351 = smul.addr %s350, 4
        %s352 = scalar_lea.vmem %s5, %s351
        %p353 = pneg %p178
        %p354 = pneg %p175
        %p355 = pneg %p199
        %p356 = pneg %p196
        %p357 = pneg %p225
        %p358 = pneg %p222
        %s359 = sand.u32 %s212, 1
        %s360 = scalar_lea.sflag [#allocation6], %s359
        %s361 = sand.u32 %s212, 1
        %s362 = smul.addr %s361, 8
        %s363 = scalar_lea.vmem [#allocation10], %s362
        %s364 = smul.u32 4, %s30
        %p365 = scmp.lt.s32.totalorder %s364, 3
        %s366 = scalar_select %p365, %s364, 3
        %s367 = smul.addr %s366, 4
        %s368 = scalar_lea.vmem %s5, %s367
        %s369 = smul.u32 4, %s30
        %p371 = scmp.eq.s32.totalorder %s30, 0
        // Predicated region
        $region61: #{tpu_custom_call.1} parent=47 // pred_check
          %p372 = pneg %p371
        $region62: #{tpu_custom_call.1} parent=47 // pred_check_branch
          %374 = sbr.rel (%p372) target = $region64
        $region63: #{tpu_custom_call.1} parent=47 // pred_region
          %v375 = vld [vmem:[%s320] sm:$0xff]
          %vm376 = vcmask 261120
          %v377 = vsel %vm376, %v375, 0.0
          %378 = vadd.xlane.f32.xlu0 %v377
          %v379 = vpop.xlane.xlu0 %378
          %v380 = vrcp.pop 32.0
          %v381 = vmul.f32 %v379, %v380
          %v382 = vsub.f32 %v375, %v381
          %v383 = vmul.f32 %v382, %v382
          %v384 = vsel %vm376, %v383, 0.0
          %385 = vadd.xlane.f32.xlu0 %v384
          %v386 = vpop.xlane.xlu0 %385
          %v387 = vmul.f32 %v386, %v380
          %v388 = vadd.f32 %v387, 1e-05
          %v389 = vrsqrt.pop %v388
          %v390 = vmul.f32 %v382, %v389
          %v391 = vld [vmem:[%s1] sm:$0x1]
          %v393 = vlaneseq
          %v394 = vshrl.u32 %v393, 7
          %v395 = vsub.s32 0, %v394
          %v396 = vrot.slane %v391, %v395
          %v398 = vmul.f32 %v390, %v396
          %v399 = vld [vmem:[%s2] sm:$0x1]
          %v401 = vlaneseq
          %v402 = vshrl.u32 %v401, 7
          %v403 = vsub.s32 0, %v402
          %v404 = vrot.slane %v399, %v403
          %v406 = vadd.f32 %v398, %v404
          %v407 = vpack.c.bf16 %v406, %v406
          %vm408 = vcmask 257024
          %409 = vst.msk [vmem:[#allocation2] sm:$0xf] %vm408, %v407
          %410 = vst.msk [vmem:[#allocation3] sm:$0xff] %vm376, 0.0
        $region64: #{tpu_custom_call.1} parent=47 // pred_fallthru
          _
        %v411 = vld [vmem:[#allocation2] sm:$0xf]
        %v412 = vld [vmem:[#allocation7] sm:$0xf]
        %v413 = vld [vmem:[#allocation7 + $0x4] sm:$0xf]
        %v414 = vld [vmem:[#allocation7 + $0x8] sm:$0xf]
        %v415 = vld [vmem:[#allocation7 + $0xc] sm:$0xf]
        %v416 = vld [vmem:[#allocation9] sm:$0x1]
        %v418 = vlaneseq
        %v419 = vshrl.u32 %v418, 7
        %v420 = vsub.s32 0, %v419
        %v421 = vrot.slane %v416, %v420
        %v427 = vunpack.c.l.b16 %v412
        %v428 = vunpack.c.l.b16 %v413
        %v429 = vunpack.c.l.b16 %v414
        %v430 = vunpack.c.l.b16 %v415
        %v431 = vpack.c.b16 %v428, %v427
        %v432 = vpack.c.b16 %v430, %v429
        %vm435 = vcmask 261120
        %v437 = vsel %vm435, %v411, 0
        %439 = vmatprep.subr.bf16.mxu0 0
        %440 = vmatpush1.bf16.msra.mxu0 %v431
        %441 = vmatprep.subr.bf16.mxu0 0
        %442 = vmatpush1.bf16.msra.mxu0 %v432
        %443 = vmatprep.subr.bf16.mxu0 0
        %444 = vmatpush1.bf16.msra.mxu0 0
        %445 = vmatprep.subr.bf16.mxu0 0
        %446 = vmatpush1.bf16.msra.mxu0 0
        %447 = vmatprep.subr.bf16.mxu0 0
        %448 = vmatpush1.bf16.msra.mxu0 0
        %449 = vmatprep.subr.bf16.mxu0 0
        %450 = vmatpush1.bf16.msra.mxu0 0
        %451 = vmatprep.subr.bf16.mxu0 0
        %452 = vmatpush1.bf16.msra.mxu0 0
        %453 = vmatprep.subr.bf16.mxu0 0
        %454 = vmatpush1.bf16.msra.mxu0 0
        %455 = vmatprep.subr.bf16.mxu0 0
        %456 = vmatpush1.bf16.msra.mxu0 0
        %457 = vmatprep.subr.bf16.mxu0 0
        %458 = vmatpush1.bf16.msra.mxu0 0
        %459 = vmatprep.subr.bf16.mxu0 0
        %460 = vmatpush1.bf16.msra.mxu0 0
        %461 = vmatprep.subr.bf16.mxu0 0
        %462 = vmatpush1.bf16.msra.mxu0 0
        %463 = vmatprep.subr.bf16.mxu0 0
        %464 = vmatpush1.bf16.msra.mxu0 0
        %465 = vmatprep.subr.bf16.mxu0 0
        %466 = vmatpush1.bf16.msra.mxu0 0
        %467 = vmatprep.subr.bf16.mxu0 0
        %468 = vmatpush1.bf16.msra.mxu0 0
        %469 = vmatprep.subr.bf16.mxu0 0
        %470 = vmatpush1.bf16.msra.mxu0 0
        %471 = vmatprep.mubr.bf16.mxu0 0
        %472 = vmatmul.mubr.bf16.gmra.mrb[0].mxu0 %v437
        %v473 = vpop.f32.mrb[0].mxu0
        %v474 = vadd.f32 %v421, %v473
        %v475 = vpop.f32.mrb[0].mxu0
        %v476 = vpop.f32.mrb[0].mxu0
        %v477 = vpop.f32.mrb[0].mxu0
        %478 = vdwg.mxu0
        %v479 = vpack.c.bf16 %v474, %v474
        %481 = vrot.lane.b32.xlu0 %v479, 96
        %v482 = vpop.permute.xlu0 %481
        %vm483 = vcmask 64512
        %v485 = vsel %vm483, %v479, 0
        %v488 = vsel %vm483, %v482, 0
        %490 = vmatprep.subr.bf16.mxu0 0
        %491 = vmatpush1.bf16.xpose.msra.mxu0 %v488
        %492 = vmatprep.subr.bf16.mxu0 0
        %493 = vmatpush1.bf16.xpose.msra.mxu0 0
        %494 = vmatprep.subr.bf16.mxu0 0
        %495 = vmatpush1.bf16.xpose.msra.mxu0 0
        %496 = vmatprep.subr.bf16.mxu0 0
        %497 = vmatpush1.bf16.xpose.msra.mxu0 0
        %498 = vmatprep.subr.bf16.mxu0 0
        %499 = vmatpush1.bf16.xpose.msra.mxu0 0
        %500 = vmatprep.subr.bf16.mxu0 0
        %501 = vmatpush1.bf16.xpose.msra.mxu0 0
        %502 = vmatprep.subr.bf16.mxu0 0
        %503 = vmatpush1.bf16.xpose.msra.mxu0 0
        %504 = vmatprep.subr.bf16.mxu0 0
        %505 = vmatpush1.bf16.xpose.msra.mxu0 0
        %506 = vmatprep.subr.bf16.mxu0 0
        %507 = vmatpush1.bf16.xpose.msra.mxu0 0
        %508 = vmatprep.subr.bf16.mxu0 0
        %509 = vmatpush1.bf16.xpose.msra.mxu0 0
        %510 = vmatprep.subr.bf16.mxu0 0
        %511 = vmatpush1.bf16.xpose.msra.mxu0 0
        %512 = vmatprep.subr.bf16.mxu0 0
        %513 = vmatpush1.bf16.xpose.msra.mxu0 0
        %514 = vmatprep.subr.bf16.mxu0 0
        %515 = vmatpush1.bf16.xpose.msra.mxu0 0
        %516 = vmatprep.subr.bf16.mxu0 0
        %517 = vmatpush1.bf16.xpose.msra.mxu0 0
        %518 = vmatprep.subr.bf16.mxu0 0
        %519 = vmatpush1.bf16.xpose.msra.mxu0 0
        %520 = vmatprep.subr.bf16.mxu0 0
        %521 = vmatpush1.bf16.xpose.msra.mxu0 0
        %522 = vmatprep.mubr.bf16.mxu0 0
        %523 = vmatmul.mubr.bf16.gmra.mrb[0].mxu0 %v485
        %v524 = vpop.f32.mrb[0].mxu0
        %v525 = vadd.f32 0.0, %v524
        %v526 = vpop.f32.mrb[0].mxu0
        %v527 = vpop.f32.mrb[0].mxu0
        %v528 = vpop.f32.mrb[0].mxu0
        %529 = vdwg.mxu0
        %v530 = vsel %vm483, %v525, -inf
        %531 = vmax.xlane.f32.xlu0 %v530
        %v532 = vpop.xlane.xlu0 %531
        %v533 = vsub.f32 %v525, %v532
        %v534 = vmul.f32 %v533, 1.442695
        %v535 = vpow.pop %v534
        %v536 = vsel %vm483, %v535, 0.0
        %537 = vadd.xlane.f32.xlu0 %v536
        %v538 = vpop.xlane.xlu0 %537
        %v539 = vrcp.pop %v538
        %v540 = vmul.f32 %v535, %v539
        %v541 = vpack.c.bf16 %v540, %v540
        %542 = vrot.lane.b32.xlu0 %v479, 64
        %v543 = vpop.permute.xlu0 %542
        %v545 = vsel %vm483, %v541, 0
        %vm547 = vcmask 1043456
        %v549 = vsel %vm547, %v543, 0
        %551 = vmatprep.subr.bf16.mxu0 0
        %552 = vmatpush1.bf16.msra.mxu0 %v549
        %553 = vmatprep.subr.bf16.mxu0 0
        %554 = vmatpush1.bf16.msra.mxu0 0
        %555 = vmatprep.subr.bf16.mxu0 0
        %556 = vmatpush1.bf16.msra.mxu0 0
        %557 = vmatprep.subr.bf16.mxu0 0
        %558 = vmatpush1.bf16.msra.mxu0 0
        %559 = vmatprep.subr.bf16.mxu0 0
        %560 = vmatpush1.bf16.msra.mxu0 0
        %561 = vmatprep.subr.bf16.mxu0 0
        %562 = vmatpush1.bf16.msra.mxu0 0
        %563 = vmatprep.subr.bf16.mxu0 0
        %564 = vmatpush1.bf16.msra.mxu0 0
        %565 = vmatprep.subr.bf16.mxu0 0
        %566 = vmatpush1.bf16.msra.mxu0 0
        %567 = vmatprep.subr.bf16.mxu0 0
        %568 = vmatpush1.bf16.msra.mxu0 0
        %569 = vmatprep.subr.bf16.mxu0 0
        %570 = vmatpush1.bf16.msra.mxu0 0
        %571 = vmatprep.subr.bf16.mxu0 0
        %572 = vmatpush1.bf16.msra.mxu0 0
        %573 = vmatprep.subr.bf16.mxu0 0
        %574 = vmatpush1.bf16.msra.mxu0 0
        %575 = vmatprep.subr.bf16.mxu0 0
        %576 = vmatpush1.bf16.msra.mxu0 0
        %577 = vmatprep.subr.bf16.mxu0 0
        %578 = vmatpush1.bf16.msra.mxu0 0
        %579 = vmatprep.subr.bf16.mxu0 0
        %580 = vmatpush1.bf16.msra.mxu0 0
        %581 = vmatprep.subr.bf16.mxu0 0
        %582 = vmatpush1.bf16.msra.mxu0 0
        %583 = vmatprep.mubr.bf16.mxu0 0
        %584 = vmatmul.mubr.bf16.gmra.mrb[0].mxu0 %v545
        %v585 = vpop.f32.mrb[0].mxu0
        %v586 = vadd.f32 0.0, %v585
        %v587 = vpop.f32.mrb[0].mxu0
        %v588 = vpop.f32.mrb[0].mxu0
        %v589 = vpop.f32.mrb[0].mxu0
        %590 = vdwg.mxu0
        %v591 = vld [vmem:[#allocation3] sm:$0xff]
        %v592 = vpack.c.bf16 %v586, %v586
        %v593 = vld [vmem:[%s368] sm:$0xf]
        %v595 = vsel %vm483, %v592, 0
        %v598 = vsel %vm547, %v593, 0
        %600 = vmatprep.subr.bf16.mxu0 0
        %601 = vmatpush1.bf16.msra.mxu0 %v598
        %602 = vmatprep.subr.bf16.mxu0 0
        %603 = vmatpush1.bf16.msra.mxu0 0
        %604 = vmatprep.subr.bf16.mxu0 0
        %605 = vmatpush1.bf16.msra.mxu0 0
        %606 = vmatprep.subr.bf16.mxu0 0
        %607 = vmatpush1.bf16.msra.mxu0 0
        %608 = vmatprep.subr.bf16.mxu0 0
        %609 = vmatpush1.bf16.msra.mxu0 0
        %610 = vmatprep.subr.bf16.mxu0 0
        %611 = vmatpush1.bf16.msra.mxu0 0
        %612 = vmatprep.subr.bf16.mxu0 0
        %613 = vmatpush1.bf16.msra.mxu0 0
        %614 = vmatprep.subr.bf16.mxu0 0
        %615 = vmatpush1.bf16.msra.mxu0 0
        %616 = vmatprep.subr.bf16.mxu0 0
        %617 = vmatpush1.bf16.msra.mxu0 0
        %618 = vmatprep.subr.bf16.mxu0 0
        %619 = vmatpush1.bf16.msra.mxu0 0
        %620 = vmatprep.subr.bf16.mxu0 0
        %621 = vmatpush1.bf16.msra.mxu0 0
        %622 = vmatprep.subr.bf16.mxu0 0
        %623 = vmatpush1.bf16.msra.mxu0 0
        %624 = vmatprep.subr.bf16.mxu0 0
        %625 = vmatpush1.bf16.msra.mxu0 0
        %626 = vmatprep.subr.bf16.mxu0 0
        %627 = vmatpush1.bf16.msra.mxu0 0
        %628 = vmatprep.subr.bf16.mxu0 0
        %629 = vmatpush1.bf16.msra.mxu0 0
        %630 = vmatprep.subr.bf16.mxu0 0
        %631 = vmatpush1.bf16.msra.mxu0 0
        %632 = vmatprep.mubr.bf16.mxu0 0
        %633 = vmatmul.mubr.bf16.gmra.mrb[0].mxu0 %v595
        %v634 = vpop.f32.mrb[0].mxu0
        %v635 = vadd.f32 0.0, %v634
        %v636 = vpop.f32.mrb[0].mxu0
        %v637 = vpop.f32.mrb[0].mxu0
        %v638 = vpop.f32.mrb[0].mxu0
        %639 = vdwg.mxu0
        %v640 = vadd.f32 %v591, %v635
        %641 = vst.msk [vmem:[#allocation3] sm:$0xff] %vm435, %v640
        %642 = vrot.lane.b32.xlu0 %v479, 120
        %v643 = vpop.permute.xlu0 %642
        %644 = vrot.lane.b32.xlu0 %v479, 88
        %v645 = vpop.permute.xlu0 %644
        %v647 = vsel %vm483, %v643, 0
        %v650 = vsel %vm483, %v645, 0
        %652 = vmatprep.subr.bf16.mxu0 0
        %653 = vmatpush1.bf16.xpose.msra.mxu0 %v650
        %654 = vmatprep.subr.bf16.mxu0 0
        %655 = vmatpush1.bf16.xpose.msra.mxu0 0
        %656 = vmatprep.subr.bf16.mxu0 0
        %657 = vmatpush1.bf16.xpose.msra.mxu0 0
        %658 = vmatprep.subr.bf16.mxu0 0
        %659 = vmatpush1.bf16.xpose.msra.mxu0 0
        %660 = vmatprep.subr.bf16.mxu0 0
        %661 = vmatpush1.bf16.xpose.msra.mxu0 0
        %662 = vmatprep.subr.bf16.mxu0 0
        %663 = vmatpush1.bf16.xpose.msra.mxu0 0
        %664 = vmatprep.subr.bf16.mxu0 0
        %665 = vmatpush1.bf16.xpose.msra.mxu0 0
        %666 = vmatprep.subr.bf16.mxu0 0
        %667 = vmatpush1.bf16.xpose.msra.mxu0 0
        %668 = vmatprep.subr.bf16.mxu0 0
        %669 = vmatpush1.bf16.xpose.msra.mxu0 0
        %670 = vmatprep.subr.bf16.mxu0 0
        %671 = vmatpush1.bf16.xpose.msra.mxu0 0
        %672 = vmatprep.subr.bf16.mxu0 0
        %673 = vmatpush1.bf16.xpose.msra.mxu0 0
        %674 = vmatprep.subr.bf16.mxu0 0
        %675 = vmatpush1.bf16.xpose.msra.mxu0 0
        %676 = vmatprep.subr.bf16.mxu0 0
        %677 = vmatpush1.bf16.xpose.msra.mxu0 0
        %678 = vmatprep.subr.bf16.mxu0 0
        %679 = vmatpush1.bf16.xpose.msra.mxu0 0
        %680 = vmatprep.subr.bf16.mxu0 0
        %681 = vmatpush1.bf16.xpose.msra.mxu0 0
        %682 = vmatprep.subr.bf16.mxu0 0
        %683 = vmatpush1.bf16.xpose.msra.mxu0 0
        %684 = vmatprep.mubr.bf16.mxu0 0
        %685 = vmatmul.mubr.bf16.gmra.mrb[0].mxu0 %v647
        %v686 = vpop.f32.mrb[0].mxu0
        %v687 = vadd.f32 0.0, %v686
        %v688 = vpop.f32.mrb[0].mxu0
        %v689 = vpop.f32.mrb[0].mxu0
        %v690 = vpop.f32.mrb[0].mxu0
        %691 = vdwg.mxu0
        %v692 = vsel %vm483, %v687, -inf
        %693 = vmax.xlane.f32.xlu0 %v692
        %v694 = vpop.xlane.xlu0 %693
        %v695 = vsub.f32 %v687, %v694
        %v696 = vmul.f32 %v695, 1.442695
        %v697 = vpow.pop %v696
        %v698 = vsel %vm483, %v697, 0.0
        %699 = vadd.xlane.f32.xlu0 %v698
        %v700 = vpop.xlane.xlu0 %699
        %v701 = vrcp.pop %v700
        %v702 = vmul.f32 %v697, %v701
        %v703 = vpack.c.bf16 %v702, %v702
        %704 = vrot.lane.b32.xlu0 %v479, 56
        %v705 = vpop.permute.xlu0 %704
        %v707 = vsel %vm483, %v703, 0
        %v710 = vsel %vm547, %v705, 0
        %712 = vmatprep.subr.bf16.mxu0 0
        %713 = vmatpush1.bf16.msra.mxu0 %v710
        %714 = vmatprep.subr.bf16.mxu0 0
        %715 = vmatpush1.bf16.msra.mxu0 0
        %716 = vmatprep.subr.bf16.mxu0 0
        %717 = vmatpush1.bf16.msra.mxu0 0
        %718 = vmatprep.subr.bf16.mxu0 0
        %719 = vmatpush1.bf16.msra.mxu0 0
        %720 = vmatprep.subr.bf16.mxu0 0
        %721 = vmatpush1.bf16.msra.mxu0 0
        %722 = vmatprep.subr.bf16.mxu0 0
        %723 = vmatpush1.bf16.msra.mxu0 0
        %724 = vmatprep.subr.bf16.mxu0 0
        %725 = vmatpush1.bf16.msra.mxu0 0
        %726 = vmatprep.subr.bf16.mxu0 0
        %727 = vmatpush1.bf16.msra.mxu0 0
        %728 = vmatprep.subr.bf16.mxu0 0
        %729 = vmatpush1.bf16.msra.mxu0 0
        %730 = vmatprep.subr.bf16.mxu0 0
        %731 = vmatpush1.bf16.msra.mxu0 0
        %732 = vmatprep.subr.bf16.mxu0 0
        %733 = vmatpush1.bf16.msra.mxu0 0
        %734 = vmatprep.subr.bf16.mxu0 0
        %735 = vmatpush1.bf16.msra.mxu0 0
        %736 = vmatprep.subr.bf16.mxu0 0
        %737 = vmatpush1.bf16.msra.mxu0 0
        %738 = vmatprep.subr.bf16.mxu0 0
        %739 = vmatpush1.bf16.msra.mxu0 0
        %740 = vmatprep.subr.bf16.mxu0 0
        %741 = vmatpush1.bf16.msra.mxu0 0
        %742 = vmatprep.subr.bf16.mxu0 0
        %743 = vmatpush1.bf16.msra.mxu0 0
        %744 = vmatprep.mubr.bf16.mxu0 0
        %745 = vmatmul.mubr.bf16.gmra.mrb[0].mxu0 %v707
        %v746 = vpop.f32.mrb[0].mxu0
        %v747 = vadd.f32 0.0, %v746
        %v748 = vpop.f32.mrb[0].mxu0
        %v749 = vpop.f32.mrb[0].mxu0
        %v750 = vpop.f32.mrb[0].mxu0
        %751 = vdwg.mxu0
        %v752 = vld [vmem:[#allocation3] sm:$0xff]
        %v753 = vpack.c.bf16 %v747, %v747
        %s754 = scalar_lea.vmem %s368, 4
        %v755 = vld [vmem:[%s754] sm:$0xf]
        %v757 = vsel %vm483, %v753, 0
        %v760 = vsel %vm547, %v755, 0
        %762 = vmatprep.subr.bf16.mxu0 0
        %763 = vmatpush1.bf16.msra.mxu0 %v760
        %764 = vmatprep.subr.bf16.mxu0 0
        %765 = vmatpush1.bf16.msra.mxu0 0
        %766 = vmatprep.subr.bf16.mxu0 0
        %767 = vmatpush1.bf16.msra.mxu0 0
        %768 = vmatprep.subr.bf16.mxu0 0
        %769 = vmatpush1.bf16.msra.mxu0 0
        %770 = vmatprep.subr.bf16.mxu0 0
        %771 = vmatpush1.bf16.msra.mxu0 0
        %772 = vmatprep.subr.bf16.mxu0 0
        %773 = vmatpush1.bf16.msra.mxu0 0
        %774 = vmatprep.subr.bf16.mxu0 0
        %775 = vmatpush1.bf16.msra.mxu0 0
        %776 = vmatprep.subr.bf16.mxu0 0
        %777 = vmatpush1.bf16.msra.mxu0 0
        %778 = vmatprep.subr.bf16.mxu0 0
        %779 = vmatpush1.bf16.msra.mxu0 0
        %780 = vmatprep.subr.bf16.mxu0 0
        %781 = vmatpush1.bf16.msra.mxu0 0
        %782 = vmatprep.subr.bf16.mxu0 0
        %783 = vmatpush1.bf16.msra.mxu0 0
        %784 = vmatprep.subr.bf16.mxu0 0
        %785 = vmatpush1.bf16.msra.mxu0 0
        %786 = vmatprep.subr.bf16.mxu0 0
        %787 = vmatpush1.bf16.msra.mxu0 0
        %788 = vmatprep.subr.bf16.mxu0 0
        %789 = vmatpush1.bf16.msra.mxu0 0
        %790 = vmatprep.subr.bf16.mxu0 0
        %791 = vmatpush1.bf16.msra.mxu0 0
        %792 = vmatprep.subr.bf16.mxu0 0
        %793 = vmatpush1.bf16.msra.mxu0 0
        %794 = vmatprep.mubr.bf16.mxu0 0
        %795 = vmatmul.mubr.bf16.gmra.mrb[0].mxu0 %v757
        %v796 = vpop.f32.mrb[0].mxu0
        %v797 = vadd.f32 0.0, %v796
        %v798 = vpop.f32.mrb[0].mxu0
        %v799 = vpop.f32.mrb[0].mxu0
        %v800 = vpop.f32.mrb[0].mxu0
        %801 = vdwg.mxu0
        %v802 = vadd.f32 %v752, %v797
        %803 = vst.msk [vmem:[#allocation3] sm:$0xff] %vm435, %v802
        %804 = vrot.lane.b32.xlu0 %v479, 112
        %v805 = vpop.permute.xlu0 %804
        %806 = vrot.lane.b32.xlu0 %v479, 80
        %v807 = vpop.permute.xlu0 %806
        %v809 = vsel %vm483, %v805, 0
        %v812 = vsel %vm483, %v807, 0
        %814 = vmatprep.subr.bf16.mxu0 0
        %815 = vmatpush1.bf16.xpose.msra.mxu0 %v812
        %816 = vmatprep.subr.bf16.mxu0 0
        %817 = vmatpush1.bf16.xpose.msra.mxu0 0
        %818 = vmatprep.subr.bf16.mxu0 0
        %819 = vmatpush1.bf16.xpose.msra.mxu0 0
        %820 = vmatprep.subr.bf16.mxu0 0
        %821 = vmatpush1.bf16.xpose.msra.mxu0 0
        %822 = vmatprep.subr.bf16.mxu0 0
        %823 = vmatpush1.bf16.xpose.msra.mxu0 0
        %824 = vmatprep.subr.bf16.mxu0 0
        %825 = vmatpush1.bf16.xpose.msra.mxu0 0
        %826 = vmatprep.subr.bf16.mxu0 0
        %827 = vmatpush1.bf16.xpose.msra.mxu0 0
        %828 = vmatprep.subr.bf16.mxu0 0
        %829 = vmatpush1.bf16.xpose.msra.mxu0 0
        %830 = vmatprep.subr.bf16.mxu0 0
        %831 = vmatpush1.bf16.xpose.msra.mxu0 0
        %832 = vmatprep.subr.bf16.mxu0 0
        %833 = vmatpush1.bf16.xpose.msra.mxu0 0
        %834 = vmatprep.subr.bf16.mxu0 0
        %835 = vmatpush1.bf16.xpose.msra.mxu0 0
        %836 = vmatprep.subr.bf16.mxu0 0
        %837 = vmatpush1.bf16.xpose.msra.mxu0 0
        %838 = vmatprep.subr.bf16.mxu0 0
        %839 = vmatpush1.bf16.xpose.msra.mxu0 0
        %840 = vmatprep.subr.bf16.mxu0 0
        %841 = vmatpush1.bf16.xpose.msra.mxu0 0
        %842 = vmatprep.subr.bf16.mxu0 0
        %843 = vmatpush1.bf16.xpose.msra.mxu0 0
        %844 = vmatprep.subr.bf16.mxu0 0
        %845 = vmatpush1.bf16.xpose.msra.mxu0 0
        %846 = vmatprep.mubr.bf16.mxu0 0
        %847 = vmatmul.mubr.bf16.gmra.mrb[0].mxu0 %v809
        %v848 = vpop.f32.mrb[0].mxu0
        %v849 = vadd.f32 0.0, %v848
        %v850 = vpop.f32.mrb[0].mxu0
        %v851 = vpop.f32.mrb[0].mxu0
        %v852 = vpop.f32.mrb[0].mxu0
        %853 = vdwg.mxu0
        %v854 = vsel %vm483, %v849, -inf
        %855 = vmax.xlane.f32.xlu0 %v854
        %v856 = vpop.xlane.xlu0 %855
        %v857 = vsub.f32 %v849, %v856
        %v858 = vmul.f32 %v857, 1.442695
        %v859 = vpow.pop %v858
        %v860 = vsel %vm483, %v859, 0.0
        %861 = vadd.xlane.f32.xlu0 %v860
        %v862 = vpop.xlane.xlu0 %861
        %v863 = vrcp.pop %v862
        %v864 = vmul.f32 %v859, %v863
        %v865 = vpack.c.bf16 %v864, %v864
        %866 = vrot.lane.b32.xlu0 %v479, 48
        %v867 = vpop.permute.xlu0 %866
        %v869 = vsel %vm483, %v865, 0
        %v872 = vsel %vm547, %v867, 0
        %874 = vmatprep.subr.bf16.mxu0 0
        %875 = vmatpush1.bf16.msra.mxu0 %v872
        %876 = vmatprep.subr.bf16.mxu0 0
        %877 = vmatpush1.bf16.msra.mxu0 0
        %878 = vmatprep.subr.bf16.mxu0 0
        %879 = vmatpush1.bf16.msra.mxu0 0
        %880 = vmatprep.subr.bf16.mxu0 0
        %881 = vmatpush1.bf16.msra.mxu0 0
        %882 = vmatprep.subr.bf16.mxu0 0
        %883 = vmatpush1.bf16.msra.mxu0 0
        %884 = vmatprep.subr.bf16.mxu0 0
        %885 = vmatpush1.bf16.msra.mxu0 0
        %886 = vmatprep.subr.bf16.mxu0 0
        %887 = vmatpush1.bf16.msra.mxu0 0
        %888 = vmatprep.subr.bf16.mxu0 0
        %889 = vmatpush1.bf16.msra.mxu0 0
        %890 = vmatprep.subr.bf16.mxu0 0
        %891 = vmatpush1.bf16.msra.mxu0 0
        %892 = vmatprep.subr.bf16.mxu0 0
        %893 = vmatpush1.bf16.msra.mxu0 0
        %894 = vmatprep.subr.bf16.mxu0 0
        %895 = vmatpush1.bf16.msra.mxu0 0
        %896 = vmatprep.subr.bf16.mxu0 0
        %897 = vmatpush1.bf16.msra.mxu0 0
        %898 = vmatprep.subr.bf16.mxu0 0
        %899 = vmatpush1.bf16.msra.mxu0 0
        %900 = vmatprep.subr.bf16.mxu0 0
        %901 = vmatpush1.bf16.msra.mxu0 0
        %902 = vmatprep.subr.bf16.mxu0 0
        %903 = vmatpush1.bf16.msra.mxu0 0
        %904 = vmatprep.subr.bf16.mxu0 0
        %905 = vmatpush1.bf16.msra.mxu0 0
        %906 = vmatprep.mubr.bf16.mxu0 0
        %907 = vmatmul.mubr.bf16.gmra.mrb[0].mxu0 %v869
        %v908 = vpop.f32.mrb[0].mxu0
        %v909 = vadd.f32 0.0, %v908
        %v910 = vpop.f32.mrb[0].mxu0
        %v911 = vpop.f32.mrb[0].mxu0
        %v912 = vpop.f32.mrb[0].mxu0
        %913 = vdwg.mxu0
        %v914 = vld [vmem:[#allocation3] sm:$0xff]
        %v915 = vpack.c.bf16 %v909, %v909
        %s916 = scalar_lea.vmem %s368, 8
        %v917 = vld [vmem:[%s916] sm:$0xf]
        %v919 = vsel %vm483, %v915, 0
        %v922 = vsel %vm547, %v917, 0
        %924 = vmatprep.subr.bf16.mxu0 0
        %925 = vmatpush1.bf16.msra.mxu0 %v922
        %926 = vmatprep.subr.bf16.mxu0 0
        %927 = vmatpush1.bf16.msra.mxu0 0
        %928 = vmatprep.subr.bf16.mxu0 0
        %929 = vmatpush1.bf16.msra.mxu0 0
        %930 = vmatprep.subr.bf16.mxu0 0
        %931 = vmatpush1.bf16.msra.mxu0 0
        %932 = vmatprep.subr.bf16.mxu0 0
        %933 = vmatpush1.bf16.msra.mxu0 0
        %934 = vmatprep.subr.bf16.mxu0 0
        %935 = vmatpush1.bf16.msra.mxu0 0
        %936 = vmatprep.subr.bf16.mxu0 0
        %937 = vmatpush1.bf16.msra.mxu0 0
        %938 = vmatprep.subr.bf16.mxu0 0
        %939 = vmatpush1.bf16.msra.mxu0 0
        %940 = vmatprep.subr.bf16.mxu0 0
        %941 = vmatpush1.bf16.msra.mxu0 0
        %942 = vmatprep.subr.bf16.mxu0 0
        %943 = vmatpush1.bf16.msra.mxu0 0
        %944 = vmatprep.subr.bf16.mxu0 0
        %945 = vmatpush1.bf16.msra.mxu0 0
        %946 = vmatprep.subr.bf16.mxu0 0
        %947 = vmatpush1.bf16.msra.mxu0 0
        %948 = vmatprep.subr.bf16.mxu0 0
        %949 = vmatpush1.bf16.msra.mxu0 0
        %950 = vmatprep.subr.bf16.mxu0 0
        %951 = vmatpush1.bf16.msra.mxu0 0
        %952 = vmatprep.subr.bf16.mxu0 0
        %953 = vmatpush1.bf16.msra.mxu0 0
        %954 = vmatprep.subr.bf16.mxu0 0
        %955 = vmatpush1.bf16.msra.mxu0 0
        %956 = vmatprep.mubr.bf16.mxu0 0
        %957 = vmatmul.mubr.bf16.gmra.mrb[0].mxu0 %v919
        %v958 = vpop.f32.mrb[0].mxu0
        %v959 = vadd.f32 0.0, %v958
        %v960 = vpop.f32.mrb[0].mxu0
        %v961 = vpop.f32.mrb[0].mxu0
        %v962 = vpop.f32.mrb[0].mxu0
        %963 = vdwg.mxu0
        %v964 = vadd.f32 %v914, %v959
        %965 = vst.msk [vmem:[#allocation3] sm:$0xff] %vm435, %v964
        %966 = vrot.lane.b32.xlu0 %v479, 104
        %v967 = vpop.permute.xlu0 %966
        %968 = vrot.lane.b32.xlu0 %v479, 72
        %v969 = vpop.permute.xlu0 %968
        %v971 = vsel %vm483, %v967, 0
        %v974 = vsel %vm483, %v969, 0
        %976 = vmatprep.subr.bf16.mxu0 0
        %977 = vmatpush1.bf16.xpose.msra.mxu0 %v974
        %978 = vmatprep.subr.bf16.mxu0 0
        %979 = vmatpush1.bf16.xpose.msra.mxu0 0
        %980 = vmatprep.subr.bf16.mxu0 0
        %981 = vmatpush1.bf16.xpose.msra.mxu0 0
        %982 = vmatprep.subr.bf16.mxu0 0
        %983 = vmatpush1.bf16.xpose.msra.mxu0 0
        %984 = vmatprep.subr.bf16.mxu0 0
        %985 = vmatpush1.bf16.xpose.msra.mxu0 0
        %986 = vmatprep.subr.bf16.mxu0 0
        %987 = vmatpush1.bf16.xpose.msra.mxu0 0
        %988 = vmatprep.subr.bf16.mxu0 0
        %989 = vmatpush1.bf16.xpose.msra.mxu0 0
        %990 = vmatprep.subr.bf16.mxu0 0
        %991 = vmatpush1.bf16.xpose.msra.mxu0 0
        %992 = vmatprep.subr.bf16.mxu0 0
        %993 = vmatpush1.bf16.xpose.msra.mxu0 0
        %994 = vmatprep.subr.bf16.mxu0 0
        %995 = vmatpush1.bf16.xpose.msra.mxu0 0
        %996 = vmatprep.subr.bf16.mxu0 0
        %997 = vmatpush1.bf16.xpose.msra.mxu0 0
        %998 = vmatprep.subr.bf16.mxu0 0
        %999 = vmatpush1.bf16.xpose.msra.mxu0 0
        %1000 = vmatprep.subr.bf16.mxu0 0
        %1001 = vmatpush1.bf16.xpose.msra.mxu0 0
        %1002 = vmatprep.subr.bf16.mxu0 0
        %1003 = vmatpush1.bf16.xpose.msra.mxu0 0
        %1004 = vmatprep.subr.bf16.mxu0 0
        %1005 = vmatpush1.bf16.xpose.msra.mxu0 0
        %1006 = vmatprep.subr.bf16.mxu0 0
        %1007 = vmatpush1.bf16.xpose.msra.mxu0 0
        %1008 = vmatprep.mubr.bf16.mxu0 0
        %1009 = vmatmul.mubr.bf16.gmra.mrb[0].mxu0 %v971
        %v1010 = vpop.f32.mrb[0].mxu0
        %v1011 = vadd.f32 0.0, %v1010
        %v1012 = vpop.f32.mrb[0].mxu0
        %v1013 = vpop.f32.mrb[0].mxu0
        %v1014 = vpop.f32.mrb[0].mxu0
        %1015 = vdwg.mxu0
        %v1016 = vsel %vm483, %v1011, -inf
        %1017 = vmax.xlane.f32.xlu0 %v1016
        %v1018 = vpop.xlane.xlu0 %1017
        %v1019 = vsub.f32 %v1011, %v1018
        %v1020 = vmul.f32 %v1019, 1.442695
        %v1021 = vpow.pop %v1020
        %v1022 = vsel %vm483, %v1021, 0.0
        %1023 = vadd.xlane.f32.xlu0 %v1022
        %v1024 = vpop.xlane.xlu0 %1023
        %v1025 = vrcp.pop %v1024
        %v1026 = vmul.f32 %v1021, %v1025
        %v1027 = vpack.c.bf16 %v1026, %v1026
        %1028 = vrot.lane.b32.xlu0 %v479, 40
        %v1029 = vpop.permute.xlu0 %1028
        %v1031 = vsel %vm483, %v1027, 0
        %v1034 = vsel %vm547, %v1029, 0
        %1036 = vmatprep.subr.bf16.mxu0 0
        %1037 = vmatpush1.bf16.msra.mxu0 %v1034
        %1038 = vmatprep.subr.bf16.mxu0 0
        %1039 = vmatpush1.bf16.msra.mxu0 0
        %1040 = vmatprep.subr.bf16.mxu0 0
        %1041 = vmatpush1.bf16.msra.mxu0 0
        %1042 = vmatprep.subr.bf16.mxu0 0
        %1043 = vmatpush1.bf16.msra.mxu0 0
        %1044 = vmatprep.subr.bf16.mxu0 0
        %1045 = vmatpush1.bf16.msra.mxu0 0
        %1046 = vmatprep.subr.bf16.mxu0 0
        %1047 = vmatpush1.bf16.msra.mxu0 0
        %1048 = vmatprep.subr.bf16.mxu0 0
        %1049 = vmatpush1.bf16.msra.mxu0 0
        %1050 = vmatprep.subr.bf16.mxu0 0
        %1051 = vmatpush1.bf16.msra.mxu0 0
        %1052 = vmatprep.subr.bf16.mxu0 0
        %1053 = vmatpush1.bf16.msra.mxu0 0
        %1054 = vmatprep.subr.bf16.mxu0 0
        %1055 = vmatpush1.bf16.msra.mxu0 0
        %1056 = vmatprep.subr.bf16.mxu0 0
        %1057 = vmatpush1.bf16.msra.mxu0 0
        %1058 = vmatprep.subr.bf16.mxu0 0
        %1059 = vmatpush1.bf16.msra.mxu0 0
        %1060 = vmatprep.subr.bf16.mxu0 0
        %1061 = vmatpush1.bf16.msra.mxu0 0
        %1062 = vmatprep.subr.bf16.mxu0 0
        %1063 = vmatpush1.bf16.msra.mxu0 0
        %1064 = vmatprep.subr.bf16.mxu0 0
        %1065 = vmatpush1.bf16.msra.mxu0 0
        %1066 = vmatprep.subr.bf16.mxu0 0
        %1067 = vmatpush1.bf16.msra.mxu0 0
        %1068 = vmatprep.mubr.bf16.mxu0 0
        %1069 = vmatmul.mubr.bf16.gmra.mrb[0].mxu0 %v1031
        %v1070 = vpop.f32.mrb[0].mxu0
        %v1071 = vadd.f32 0.0, %v1070
        %v1072 = vpop.f32.mrb[0].mxu0
        %v1073 = vpop.f32.mrb[0].mxu0
        %v1074 = vpop.f32.mrb[0].mxu0
        %1075 = vdwg.mxu0
        %v1076 = vld [vmem:[#allocation3] sm:$0xff]
        %v1077 = vpack.c.bf16 %v1071, %v1071
        %s1078 = scalar_lea.vmem %s368, 12
        %v1079 = vld [vmem:[%s1078] sm:$0xf]
        %v1081 = vsel %vm483, %v1077, 0
        %v1084 = vsel %vm547, %v1079, 0
        %1086 = vmatprep.subr.bf16.mxu0 0
        %1087 = vmatpush1.bf16.msra.mxu0 %v1084
        %1088 = vmatprep.subr.bf16.mxu0 0
        %1089 = vmatpush1.bf16.msra.mxu0 0
        %1090 = vmatprep.subr.bf16.mxu0 0
        %1091 = vmatpush1.bf16.msra.mxu0 0
        %1092 = vmatprep.subr.bf16.mxu0 0
        %1093 = vmatpush1.bf16.msra.mxu0 0
        %1094 = vmatprep.subr.bf16.mxu0 0
        %1095 = vmatpush1.bf16.msra.mxu0 0
        %1096 = vmatprep.subr.bf16.mxu0 0
        %1097 = vmatpush1.bf16.msra.mxu0 0
        %1098 = vmatprep.subr.bf16.mxu0 0
        %1099 = vmatpush1.bf16.msra.mxu0 0
        %1100 = vmatprep.subr.bf16.mxu0 0
        %1101 = vmatpush1.bf16.msra.mxu0 0
        %1102 = vmatprep.subr.bf16.mxu0 0
        %1103 = vmatpush1.bf16.msra.mxu0 0
        %1104 = vmatprep.subr.bf16.mxu0 0
        %1105 = vmatpush1.bf16.msra.mxu0 0
        %1106 = vmatprep.subr.bf16.mxu0 0
        %1107 = vmatpush1.bf16.msra.mxu0 0
        %1108 = vmatprep.subr.bf16.mxu0 0
        %1109 = vmatpush1.bf16.msra.mxu0 0
        %1110 = vmatprep.subr.bf16.mxu0 0
        %1111 = vmatpush1.bf16.msra.mxu0 0
        %1112 = vmatprep.subr.bf16.mxu0 0
        %1113 = vmatpush1.bf16.msra.mxu0 0
        %1114 = vmatprep.subr.bf16.mxu0 0
        %1115 = vmatpush1.bf16.msra.mxu0 0
        %1116 = vmatprep.subr.bf16.mxu0 0
        %1117 = vmatpush1.bf16.msra.mxu0 0
        %1118 = vmatprep.mubr.bf16.mxu0 0
        %1119 = vmatmul.mubr.bf16.gmra.mrb[0].mxu0 %v1081
        %v1120 = vpop.f32.mrb[0].mxu0
        %v1121 = vadd.f32 0.0, %v1120
        %v1122 = vpop.f32.mrb[0].mxu0
        %v1123 = vpop.f32.mrb[0].mxu0
        %v1124 = vpop.f32.mrb[0].mxu0
        %1125 = vdwg.mxu0
        %v1126 = vadd.f32 %v1076, %v1121
        %1127 = vst.msk [vmem:[#allocation3] sm:$0xff] %vm435, %v1126
        // Predicated region
        $region65: #{tpu_custom_call.1} parent=47 // pred_check
          %p1128 = pneg %p371
        $region66: #{tpu_custom_call.1} parent=47 // pred_check_branch
          %1130 = sbr.rel (%p1128) target = $region68
        $region67: #{tpu_custom_call.1} parent=47 // pred_region
          %v1131 = vld [vmem:[%s320] sm:$0xff]
          %v1132 = vld [vmem:[#allocation3] sm:$0xff]
          %v1133 = vadd.f32 %v1131, %v1132
          %v1134 = vld [vmem:[%s6] sm:$0x1]
          %v1136 = vlaneseq
          %v1137 = vshrl.u32 %v1136, 7
          %v1138 = vsub.s32 0, %v1137
          %v1139 = vrot.slane %v1134, %v1138
          %v1141 = vadd.f32 %v1133, %v1139
          %1142 = vst.msk [vmem:[%s363] sm:$0xff] %vm435, %v1141
        $region68: #{tpu_custom_call.1} parent=47 // pred_fallthru
          _
        %s1143 = sand.u32 %s212, 1
        %s1144 = scalar_lea.sflag [#allocation6], %s1143
        %s1145 = sand.u32 %s212, 1
        %s1146 = smul.addr %s1145, 8
        %s1147 = scalar_lea.vmem [#allocation10], %s1146
        // Predicated region
        $region69: #{tpu_custom_call.1} parent=47 // pred_check
          %p1148 = pneg %p222
        $region70: #{tpu_custom_call.1} parent=47 // pred_check_branch
          %1150 = sbr.rel (%p1148) target = $region72
        $region71: #{tpu_custom_call.1} parent=47 // pred_region
          %s1152 = ssub.s32 128, 128
          %1153 = vsyncadd %s1144, %s1152
          %s1154 = smul.addr %s29, 128
          %s1155 = scalar_lea.hbm %s7, %s1154
          %s1157 = sshll.u32 %s1147, 4
          %s1158 = int_to_ptr.vmem [resolvable:$true] %s1157
          %1160 = dma.vmem_to_hbm [thread:$0]  %s1158, 128, %s1155, %s1144
        $region72: #{tpu_custom_call.1} parent=47 // pred_fallthru
          _
      $region48: #{tpu_custom_call.1} parent=5 // pred_fallthru
        _
      %p1161 = scmp.le.s32.totalorder 2, %s20
      // Predicated region
      $region73: #{tpu_custom_call.1} parent=5 // pred_check
        %p1162 = pneg %p1161
      $region74: #{tpu_custom_call.1} parent=5 // pred_check_branch
        %1164 = sbr.rel (%p1162) target = $region76
      $region75: #{tpu_custom_call.1} parent=5 // pred_region
        %s1165 = ssub.s32 %s20, 2
        // Predicated region
        $region77: #{tpu_custom_call.1} parent=75 // pred_check
          %p1166 = pneg %p228
        $region78: #{tpu_custom_call.1} parent=75 // pred_check_branch
          %1168 = sbr.rel (%p1166) target = $region80
        $region79: #{tpu_custom_call.1} parent=75 // pred_region
          %s1169 = sand.u32 %s213, 1
          %s1170 = scalar_lea.sflag [#allocation6], %s1169
          %s1171 = sand.u32 %s213, 1
          %s1172 = smul.addr %s1171, 8
          %s1173 = scalar_lea.vmem [#allocation10], %s1172
          %1174 = dma.done %s1170, 128
        $region80: #{tpu_custom_call.1} parent=75 // pred_fallthru
          _
      $region76: #{tpu_custom_call.1} parent=5 // pred_fallthru
        _
    $region6: #{tpu_custom_call.1} parent=1 // loop_footer
      %s24 = sadd.s32 1, %s20
    $region7: #{tpu_custom_call.1} parent=1 // loop_footer_branch
      %19 = sbr.rel target = $region3
    $region8: #{tpu_custom_call.1} parent=1 // loop_exit
      _
    %1175 = vsyncpa [#allocation5], 1
    %s1176 = scalar_lea.sflag [#allocation5], 1
    %1177 = vsyncpa %s1176, 1
    %1178 = vsyncpa [#allocation8], 1
    %1179 = vsyncpa [#allocation6], 1
    %s1180 = scalar_lea.sflag [#allocation6], 1
    %1181 = vsyncpa %s1180, 1

</llo_original>
